<compile_context>
chip_gen: v7x
topology: tpu7x:2x2x1
jax: 0.10.0
libtpu: 0.0.40
codegen_flags: <defaults>
</compile_context>

<pallas_src>
import functools

import jax
import jax.numpy as jnp
import numpy as np
from jax import lax
from jax.experimental import pallas as pl
from jax.experimental.pallas import tpu as pltpu


# ----------------------------------------------------------------------------
# Fused Pallas kernel: embedding gather + all LSTM layers + FC head.
# ----------------------------------------------------------------------------
def _fused_lstm_fc_kernel(num_layers, T, Bp, H, tok_ref, emb_ref, *refs):
    """Fused embedding + multi-layer LSTM + linear head.

    tok_ref : (T*Bp, 1) int32  time-major token ids (padded batch)
    emb_ref : (V, E)    bf16   embedding table (VMEM resident)
    refs    : per layer l: w_ih_t (E_l, 4H) bf16, w_hh_t (H, 4H) bf16,
              b (1, 4H) f32  (i/f/o columns pre-scaled by 0.5);
              then fc_w_t (H, O) bf16, fc_b (1, O) f32; then out_ref (Bp, O) f32;
              then scratch: act_scr (T*Bp, H) bf16, pre_scr (T*Bp, 4H) f32.
    """
    n_w = 3 * num_layers
    w_refs = refs[:n_w]
    fc_w_ref = refs[n_w]
    fc_b_ref = refs[n_w + 1]
    out_ref = refs[n_w + 2]
    act_scr = refs[n_w + 3]          # (T*Bp, H)  bf16  inter-layer activations
    pre_scr = refs[n_w + 4]          # (T*Bp, 4H) f32   hoisted gate pre-acts

    V = emb_ref.shape[0]

    # ---- In-kernel embedding gather: one-hot @ table on the MXU --------------
    tok = tok_ref[...]                                         # (T*Bp, 1) i32
    vocab_iota = lax.broadcasted_iota(jnp.int32, (T * Bp, V), 1)
    onehot = (vocab_iota == tok).astype(jnp.bfloat16)          # (T*Bp, V)
    x0 = jnp.dot(onehot, emb_ref[...],
                 preferred_element_type=jnp.float32).astype(jnp.bfloat16)
    # TODO(synk): large-vocab tables do not fit VMEM; use HBM DMA row-gather.

    # ---- Hoisted per-lane affine constants: sigmoid(x) = 0.5*tanh(x/2)+0.5 ---
    # i/f/o lanes: act = 0.5*y + 0.5 ; g lanes: act = y  (weights pre-scaled).
    lane = lax.broadcasted_iota(jnp.int32, (Bp, 4 * H), 1)
    is_g = jnp.logical_and(lane >= 2 * H, lane < 3 * H)
    a_vec = jnp.where(is_g, 1.0, 0.5).astype(jnp.float32)
    b_vec = jnp.where(is_g, 0.0, 0.5).astype(jnp.float32)

    h_last = jnp.zeros((Bp, H), jnp.float32)

    for l in range(num_layers):
        w_ih = w_refs[3 * l][...]          # (E_l, 4H) bf16
        w_hh = w_refs[3 * l + 1][...]      # (H, 4H)   bf16
        bias = w_refs[3 * l + 2][...]      # (1, 4H)   f32

        x_all = x0 if l == 0 else act_scr[...]                # (T*Bp, E_l) bf16

        # Hoisted input->gates matmul for ALL time steps (one MXU call).
        pre_scr[...] = (
            jnp.dot(x_all, w_ih, preferred_element_type=jnp.float32) + bias
        )                                                      # (T*Bp, 4H) f32

        h = jnp.zeros((Bp, H), jnp.float32)
        c = jnp.zeros((Bp, H), jnp.float32)
        last_layer = (l == num_layers - 1)

        # Static time loop (T small): all slice offsets are compile-time consts.
        # TODO(synk): lax.fori_loop(..., unroll=2..4) for long sequences.
        for t in range(T):
            pre = pre_scr[pl.ds(t * Bp, Bp), :]                # (Bp, 4H) f32
            gates = pre + jnp.dot(h.astype(jnp.bfloat16), w_hh,
                                  preferred_element_type=jnp.float32)

            y = jnp.tanh(gates)                # single full-width EUP pass
            act = y * a_vec + b_vec            # one VPU FMA -> sigmoid / tanh

            i_g = act[:, 0 * H:1 * H]
            f_g = act[:, 1 * H:2 * H]
            g_g = act[:, 2 * H:3 * H]
            o_g = act[:, 3 * H:4 * H]

            c = f_g * c + i_g * g_g
            h = o_g * jnp.tanh(c)

            if not last_layer:                 # last layer's history is unused
                act_scr[pl.ds(t * Bp, Bp), :] = h.astype(jnp.bfloat16)

        h_last = h

    # Final linear head on the last time step of the last layer.
    out_ref[...] = (
        jnp.dot(h_last.astype(jnp.bfloat16), fc_w_ref[...],
                preferred_element_type=jnp.float32)
        + fc_b_ref[...]
    )


# ----------------------------------------------------------------------------
# Wrapper
# ----------------------------------------------------------------------------
def _forward_impl(tokens, kp):
    """tokens: (B, T) int32 -> (B, output_dim) float32. Eval-mode forward."""
    B, T = tokens.shape
    emb = kp["embedding"]                      # (V, E) bf16
    layers = kp["lstm_layers"]
    L = len(layers)
    H = layers[0]["w_hh_t"].shape[0]
    O = kp["fc_w_t"].shape[1]

    Bp = ((B + 7) // 8) * 8                    # fill fp32 sublanes

    # Only tiny int32 token-id plumbing stays in the wrapper; the gather itself
    # (and all activation traffic) is inside the kernel.
    tok_tm = jnp.transpose(tokens).astype(jnp.int32)          # (T, B)
    if Bp != B:
        tok_tm = jnp.pad(tok_tm, ((0, 0), (0, Bp - B)))       # (T, Bp)
    tok_tm = tok_tm.reshape(T * Bp, 1)

    kernel = functools.partial(_fused_lstm_fc_kernel, L, T, Bp, H)

    inputs = [tok_tm, emb]
    for layer in layers:
        inputs += [layer["w_ih_t"], layer["w_hh_t"], layer["b"]]
    inputs += [kp["fc_w_t"], kp["fc_b"]]

    out = pl.pallas_call(
        kernel,
        out_shape=jax.ShapeDtypeStruct((Bp, O), jnp.float32),
        in_specs=[pl.BlockSpec(memory_space=pltpu.MemorySpace.VMEM)] * len(inputs),
        out_specs=pl.BlockSpec(memory_space=pltpu.MemorySpace.VMEM),
        scratch_shapes=[
            pltpu.VMEM((T * Bp, H), jnp.bfloat16),      # inter-layer activations
            pltpu.VMEM((T * Bp, 4 * H), jnp.float32),   # hoisted gate pre-acts
        ],
        compiler_params=pltpu.CompilerParams(
            vmem_limit_bytes=32 * 1024 * 1024),
    )(*inputs)
    return out[:B]


lstm_model_forward = jax.jit(_forward_impl)


# ----------------------------------------------------------------------------
# PyTorch-equivalent parameter init (nn.Embedding / nn.LSTM / nn.Linear shapes)
# ----------------------------------------------------------------------------
def init_params(key, vocab_size, embedding_dim, hidden_dim, output_dim, num_layers):
    keys = jax.random.split(key, 1 + 4 * num_layers + 2)
    ki = iter(keys)
    scale = 1.0 / np.sqrt(hidden_dim)

    params = {
        "embedding": jax.random.normal(next(ki), (vocab_size, embedding_dim),
                                       jnp.float32),
        "lstm_layers": [],
    }
    for l in range(num_layers):
        in_dim = embedding_dim if l == 0 else hidden_dim
        params["lstm_layers"].append({
            "w_ih": jax.random.uniform(next(ki), (4 * hidden_dim, in_dim),
                                       jnp.float32, -scale, scale),
            "w_hh": jax.random.uniform(next(ki), (4 * hidden_dim, hidden_dim),
                                       jnp.float32, -scale, scale),
            "b_ih": jax.random.uniform(next(ki), (4 * hidden_dim,),
                                       jnp.float32, -scale, scale),
            "b_hh": jax.random.uniform(next(ki), (4 * hidden_dim,),
                                       jnp.float32, -scale, scale),
        })
    params["fc_w"] = jax.random.uniform(next(ki), (output_dim, hidden_dim),
                                        jnp.float32, -scale, scale)
    params["fc_b"] = jax.random.uniform(next(ki), (output_dim,),
                                        jnp.float32, -scale, scale)
    return params


def prepare_kernel_params(params):
    """Kernel-layout params: transposed bf16 weights with i/f/o columns of the
    gate matrices / bias pre-scaled by 0.5 (exact in bf16) for the single-tanh
    activation trick."""
    H = params["lstm_layers"][0]["w_hh"].shape[1]
    gate_scale = jnp.concatenate([
        jnp.full((2 * H,), 0.5, jnp.float32),   # i, f
        jnp.ones((H,), jnp.float32),            # g (tanh gate: unscaled)
        jnp.full((H,), 0.5, jnp.float32),       # o
    ])
    kp = {"embedding": params["embedding"].astype(jnp.bfloat16),
          "lstm_layers": []}
    for layer in params["lstm_layers"]:
        kp["lstm_layers"].append({
            "w_ih_t": (layer["w_ih"] * gate_scale[:, None]).T.astype(jnp.bfloat16),
            "w_hh_t": (layer["w_hh"] * gate_scale[:, None]).T.astype(jnp.bfloat16),
            "b": ((layer["b_ih"] + layer["b_hh"]) * gate_scale)[None, :],
        })
    kp["fc_w_t"] = params["fc_w"].T.astype(jnp.bfloat16)      # (H, O)
    kp["fc_b"] = params["fc_b"][None, :]                      # (1, O) f32
    return kp


# ----------------------------------------------------------------------------
# Pure-JAX reference: standard sigmoid/tanh LSTM on the raw (unscaled) params,
# bf16 matmul operands / f32 accumulation to match kernel numerics.
# ----------------------------------------------------------------------------
def reference_forward(tokens, params):
    emb_table = params["embedding"].astype(jnp.bfloat16)
    x = jnp.take(emb_table, tokens, axis=0).astype(jnp.float32)   # (B, T, E)
    B, T, _ = x.shape
    H = params["lstm_layers"][0]["w_hh"].shape[1]
    for layer in params["lstm_layers"]:
        w_ih_t = layer["w_ih"].T.astype(jnp.bfloat16)
        w_hh_t = layer["w_hh"].T.astype(jnp.bfloat16)
        b = (layer["b_ih"] + layer["b_hh"])[None, :]
        h = jnp.zeros((B, H), jnp.float32)
        c = jnp.zeros((B, H), jnp.float32)
        outs = []
        for t in range(T):
            gates = (
                jnp.dot(x[:, t, :].astype(jnp.bfloat16), w_ih_t,
                        preferred_element_type=jnp.float32)
                + jnp.dot(h.astype(jnp.bfloat16), w_hh_t,
                          preferred_element_type=jnp.float32)
                + b
            )
            i_g = jax.nn.sigmoid(gates[:, 0 * H:1 * H])
            f_g = jax.nn.sigmoid(gates[:, 1 * H:2 * H])
            g_g = jnp.tanh(gates[:, 2 * H:3 * H])
            o_g = jax.nn.sigmoid(gates[:, 3 * H:4 * H])
            c = f_g * c + i_g * g_g
            h = o_g * jnp.tanh(c)
            outs.append(h)
        x = jnp.stack(outs, axis=1)                               # (B, T, H)
    return (
        jnp.dot(x[:, -1, :].astype(jnp.bfloat16),
                params["fc_w"].T.astype(jnp.bfloat16),
                preferred_element_type=jnp.float32)
        + params["fc_b"][None, :]
    )


# ----------------------------------------------------------------------------
if __name__ == "__main__":
    vocab_size = 50
    embedding_dim = 32
    hidden_dim = 32
    output_dim = 4
    num_layers = 2
    B, T = 2, 8

    key = jax.random.PRNGKey(0)
    pkey, xkey = jax.random.split(key)
    params = init_params(pkey, vocab_size, embedding_dim, hidden_dim,
                         output_dim, num_layers)
    kparams = prepare_kernel_params(params)
    tokens = jax.random.randint(xkey, (B, T), 0, vocab_size, dtype=jnp.int32)

    out = lstm_model_forward(tokens, kparams)
    out = jax.block_until_ready(out)

    ref = reference_forward(tokens, params)
    np.testing.assert_allclose(np.asarray(out), np.asarray(ref),
                               rtol=5e-3, atol=5e-3)
    assert out.shape == (B, output_dim)
    print("KERNEL_OK")
</pallas_src>

<mosaic_0001>
module attributes {stable_mosaic.version = 11 : i64} {
  func.func @_fused_lstm_fc_kernel(%arg0: memref<64x1xi32, #tpu.memory_space<vmem>>, %arg1: memref<50x32xbf16, #tpu.memory_space<vmem>>, %arg2: memref<32x128xbf16, #tpu.memory_space<vmem>>, %arg3: memref<32x128xbf16, #tpu.memory_space<vmem>>, %arg4: memref<1x128xf32, #tpu.memory_space<vmem>>, %arg5: memref<32x128xbf16, #tpu.memory_space<vmem>>, %arg6: memref<32x128xbf16, #tpu.memory_space<vmem>>, %arg7: memref<1x128xf32, #tpu.memory_space<vmem>>, %arg8: memref<32x4xbf16, #tpu.memory_space<vmem>>, %arg9: memref<1x4xf32, #tpu.memory_space<vmem>>, %arg10: memref<8x4xf32, #tpu.memory_space<vmem>>, %arg11: memref<64x32xbf16, #tpu.memory_space<vmem>>, %arg12: memref<64x128xf32, #tpu.memory_space<vmem>>) attributes {dimension_semantics = [], scalar_prefetch = 0 : i64, scratch_operands = 2 : i64, tpu.core_type = #tpu.core_type<tc>} {
    %c0 = arith.constant 0 : index
    %c0_0 = arith.constant 0 : index
    %0 = vector.load %arg0[%c0, %c0_0] : memref<64x1xi32, #tpu.memory_space<vmem>>, vector<64x1xi32>
    %1 = tpu.iota {dimensions = array<i32: 1>} : vector<64x50xi32>
    %2 = vector.broadcast %0 : vector<64x1xi32> to vector<64x50xi32>
    %3 = arith.cmpi eq, %1, %2 : vector<64x50xi32>
    %4 = arith.extui %3 : vector<64x50xi1> to vector<64x50xi32>
    %5 = arith.sitofp %4 : vector<64x50xi32> to vector<64x50xf32>
    %6 = arith.truncf %5 : vector<64x50xf32> to vector<64x50xbf16>
    %c0_1 = arith.constant 0 : index
    %c0_2 = arith.constant 0 : index
    %7 = vector.load %arg1[%c0_1, %c0_2] : memref<50x32xbf16, #tpu.memory_space<vmem>>, vector<50x32xbf16>
    %cst = arith.constant dense<0.000000e+00> : vector<64x32xf32>
    %8 = tpu.matmul %6, %7, %cst {dimension_numbers = #tpu.dot_dimension_numbers<[1], [0], [0], [1], [0, 0, 1, 1], [], []>} : vector<64x50xbf16>, vector<50x32xbf16>, vector<64x32xf32> -> vector<64x32xf32>
    %9 = arith.truncf %8 : vector<64x32xf32> to vector<64x32xbf16>
    %10 = tpu.iota {dimensions = array<i32: 1>} : vector<8x128xi32>
    %c64_i32 = arith.constant 64 : i32
    %11 = vector.broadcast %c64_i32 : i32 to vector<8x128xi32>
    %12 = arith.cmpi sge, %10, %11 : vector<8x128xi32>
    %c96_i32 = arith.constant 96 : i32
    %13 = vector.broadcast %c96_i32 : i32 to vector<8x128xi32>
    %14 = arith.cmpi slt, %10, %13 : vector<8x128xi32>
    %15 = arith.andi %12, %14 : vector<8x128xi1>
    %cst_3 = arith.constant 1.000000e+00 : f32
    %cst_4 = arith.constant 5.000000e-01 : f32
    %16 = vector.broadcast %cst_3 : f32 to vector<8x128xf32>
    %17 = vector.broadcast %cst_4 : f32 to vector<8x128xf32>
    %18 = arith.select %15, %16, %17 : vector<8x128xi1>, vector<8x128xf32>
    %cst_5 = arith.constant 0.000000e+00 : f32
    %cst_6 = arith.constant 5.000000e-01 : f32
    %19 = vector.broadcast %cst_5 : f32 to vector<8x128xf32>
    %20 = vector.broadcast %cst_6 : f32 to vector<8x128xf32>
    %21 = arith.select %15, %19, %20 : vector<8x128xi1>, vector<8x128xf32>
    %c0_7 = arith.constant 0 : index
    %c0_8 = arith.constant 0 : index
    %22 = vector.load %arg2[%c0_7, %c0_8] : memref<32x128xbf16, #tpu.memory_space<vmem>>, vector<32x128xbf16>
    %c0_9 = arith.constant 0 : index
    %c0_10 = arith.constant 0 : index
    %23 = vector.load %arg3[%c0_9, %c0_10] : memref<32x128xbf16, #tpu.memory_space<vmem>>, vector<32x128xbf16>
    %c0_11 = arith.constant 0 : index
    %c0_12 = arith.constant 0 : index
    %24 = vector.load %arg4[%c0_11, %c0_12] : memref<1x128xf32, #tpu.memory_space<vmem>>, vector<1x128xf32>
    %cst_13 = arith.constant dense<0.000000e+00> : vector<64x128xf32>
    %25 = tpu.matmul %9, %22, %cst_13 {dimension_numbers = #tpu.dot_dimension_numbers<[1], [0], [0], [1], [0, 0, 1, 1], [], []>} : vector<64x32xbf16>, vector<32x128xbf16>, vector<64x128xf32> -> vector<64x128xf32>
    %26 = vector.broadcast %24 : vector<1x128xf32> to vector<64x128xf32>
    %27 = arith.addf %25, %26 : vector<64x128xf32>
    %c0_14 = arith.constant 0 : index
    %c0_15 = arith.constant 0 : index
    %28 = vector.load %arg12[%c0_14, %c0_15] : memref<64x128xf32, #tpu.memory_space<vmem>>, vector<64x128xf32>
    tpu.vector_store %arg12[%c0_14, %c0_15], %27 {strides = array<i32>} : memref<64x128xf32, #tpu.memory_space<vmem>>, vector<64x128xf32>,
    %cst_16 = arith.constant 0.000000e+00 : f32
    %29 = vector.broadcast %cst_16 : f32 to vector<8x32xf32>
    %cst_17 = arith.constant 0.000000e+00 : f32
    %30 = vector.broadcast %cst_17 : f32 to vector<8x32xf32>
    %c0_18 = arith.constant 0 : index
    %c0_19 = arith.constant 0 : index
    %31 = vector.load %arg12[%c0_18, %c0_19] : memref<64x128xf32, #tpu.memory_space<vmem>>, vector<8x128xf32>
    %32 = arith.truncf %29 : vector<8x32xf32> to vector<8x32xbf16>
    %cst_20 = arith.constant dense<0.000000e+00> : vector<8x128xf32>
    %33 = tpu.matmul %32, %23, %cst_20 {dimension_numbers = #tpu.dot_dimension_numbers<[1], [0], [0], [1], [0, 0, 1, 1], [], []>} : vector<8x32xbf16>, vector<32x128xbf16>, vector<8x128xf32> -> vector<8x128xf32>
    %34 = arith.addf %31, %33 : vector<8x128xf32>
    %35 = math.tanh %34 : vector<8x128xf32>
    %36 = arith.mulf %35, %18 : vector<8x128xf32>
    %37 = arith.addf %36, %21 : vector<8x128xf32>
    %38 = vector.extract_strided_slice %37 {offsets = [0, 0], sizes = [8, 32], strides = [1, 1]} : vector<8x128xf32> to vector<8x32xf32>
    %39 = vector.extract_strided_slice %37 {offsets = [0, 32], sizes = [8, 32], strides = [1, 1]} : vector<8x128xf32> to vector<8x32xf32>
    %40 = vector.extract_strided_slice %37 {offsets = [0, 64], sizes = [8, 32], strides = [1, 1]} : vector<8x128xf32> to vector<8x32xf32>
    %41 = vector.extract_strided_slice %37 {offsets = [0, 96], sizes = [8, 32], strides = [1, 1]} : vector<8x128xf32> to vector<8x32xf32>
    %42 = arith.mulf %39, %30 : vector<8x32xf32>
    %43 = arith.mulf %38, %40 : vector<8x32xf32>
    %44 = arith.addf %42, %43 : vector<8x32xf32>
    %45 = math.tanh %44 : vector<8x32xf32>
    %46 = arith.mulf %41, %45 : vector<8x32xf32>
    %47 = arith.truncf %46 : vector<8x32xf32> to vector<8x32xbf16>
    %c0_21 = arith.constant 0 : index
    %c0_22 = arith.constant 0 : index
    %48 = vector.load %arg11[%c0_21, %c0_22] : memref<64x32xbf16, #tpu.memory_space<vmem>>, vector<8x32xbf16>
    tpu.vector_store %arg11[%c0_21, %c0_22], %47 {strides = array<i32>} : memref<64x32xbf16, #tpu.memory_space<vmem>>, vector<8x32xbf16>,
    %c8 = arith.constant 8 : index
    %c0_23 = arith.constant 0 : index
    %49 = vector.load %arg12[%c8, %c0_23] : memref<64x128xf32, #tpu.memory_space<vmem>>, vector<8x128xf32>
    %50 = arith.truncf %46 : vector<8x32xf32> to vector<8x32xbf16>
    %cst_24 = arith.constant dense<0.000000e+00> : vector<8x128xf32>
    %51 = tpu.matmul %50, %23, %cst_24 {dimension_numbers = #tpu.dot_dimension_numbers<[1], [0], [0], [1], [0, 0, 1, 1], [], []>} : vector<8x32xbf16>, vector<32x128xbf16>, vector<8x128xf32> -> vector<8x128xf32>
    %52 = arith.addf %49, %51 : vector<8x128xf32>
    %53 = math.tanh %52 : vector<8x128xf32>
    %54 = arith.mulf %53, %18 : vector<8x128xf32>
    %55 = arith.addf %54, %21 : vector<8x128xf32>
    %56 = vector.extract_strided_slice %55 {offsets = [0, 0], sizes = [8, 32], strides = [1, 1]} : vector<8x128xf32> to vector<8x32xf32>
    %57 = vector.extract_strided_slice %55 {offsets = [0, 32], sizes = [8, 32], strides = [1, 1]} : vector<8x128xf32> to vector<8x32xf32>
    %58 = vector.extract_strided_slice %55 {offsets = [0, 64], sizes = [8, 32], strides = [1, 1]} : vector<8x128xf32> to vector<8x32xf32>
    %59 = vector.extract_strided_slice %55 {offsets = [0, 96], sizes = [8, 32], strides = [1, 1]} : vector<8x128xf32> to vector<8x32xf32>
    %60 = arith.mulf %57, %44 : vector<8x32xf32>
    %61 = arith.mulf %56, %58 : vector<8x32xf32>
    %62 = arith.addf %60, %61 : vector<8x32xf32>
    %63 = math.tanh %62 : vector<8x32xf32>
    %64 = arith.mulf %59, %63 : vector<8x32xf32>
    %65 = arith.truncf %64 : vector<8x32xf32> to vector<8x32xbf16>
    %c8_25 = arith.constant 8 : index
    %c0_26 = arith.constant 0 : index
    %66 = vector.load %arg11[%c8_25, %c0_26] : memref<64x32xbf16, #tpu.memory_space<vmem>>, vector<8x32xbf16>
    tpu.vector_store %arg11[%c8_25, %c0_26], %65 {strides = array<i32>} : memref<64x32xbf16, #tpu.memory_space<vmem>>, vector<8x32xbf16>,
    %c16 = arith.constant 16 : index
    %c0_27 = arith.constant 0 : index
    %67 = vector.load %arg12[%c16, %c0_27] : memref<64x128xf32, #tpu.memory_space<vmem>>, vector<8x128xf32>
    %68 = arith.truncf %64 : vector<8x32xf32> to vector<8x32xbf16>
    %cst_28 = arith.constant dense<0.000000e+00> : vector<8x128xf32>
    %69 = tpu.matmul %68, %23, %cst_28 {dimension_numbers = #tpu.dot_dimension_numbers<[1], [0], [0], [1], [0, 0, 1, 1], [], []>} : vector<8x32xbf16>, vector<32x128xbf16>, vector<8x128xf32> -> vector<8x128xf32>
    %70 = arith.addf %67, %69 : vector<8x128xf32>
    %71 = math.tanh %70 : vector<8x128xf32>
    %72 = arith.mulf %71, %18 : vector<8x128xf32>
    %73 = arith.addf %72, %21 : vector<8x128xf32>
    %74 = vector.extract_strided_slice %73 {offsets = [0, 0], sizes = [8, 32], strides = [1, 1]} : vector<8x128xf32> to vector<8x32xf32>
    %75 = vector.extract_strided_slice %73 {offsets = [0, 32], sizes = [8, 32], strides = [1, 1]} : vector<8x128xf32> to vector<8x32xf32>
    %76 = vector.extract_strided_slice %73 {offsets = [0, 64], sizes = [8, 32], strides = [1, 1]} : vector<8x128xf32> to vector<8x32xf32>
    %77 = vector.extract_strided_slice %73 {offsets = [0, 96], sizes = [8, 32], strides = [1, 1]} : vector<8x128xf32> to vector<8x32xf32>
    %78 = arith.mulf %75, %62 : vector<8x32xf32>
    %79 = arith.mulf %74, %76 : vector<8x32xf32>
    %80 = arith.addf %78, %79 : vector<8x32xf32>
    %81 = math.tanh %80 : vector<8x32xf32>
    %82 = arith.mulf %77, %81 : vector<8x32xf32>
    %83 = arith.truncf %82 : vector<8x32xf32> to vector<8x32xbf16>
    %c16_29 = arith.constant 16 : index
    %c0_30 = arith.constant 0 : index
    %84 = vector.load %arg11[%c16_29, %c0_30] : memref<64x32xbf16, #tpu.memory_space<vmem>>, vector<8x32xbf16>
    tpu.vector_store %arg11[%c16_29, %c0_30], %83 {strides = array<i32>} : memref<64x32xbf16, #tpu.memory_space<vmem>>, vector<8x32xbf16>,
    %c24 = arith.constant 24 : index
    %c0_31 = arith.constant 0 : index
    %85 = vector.load %arg12[%c24, %c0_31] : memref<64x128xf32, #tpu.memory_space<vmem>>, vector<8x128xf32>
    %86 = arith.truncf %82 : vector<8x32xf32> to vector<8x32xbf16>
    %cst_32 = arith.constant dense<0.000000e+00> : vector<8x128xf32>
    %87 = tpu.matmul %86, %23, %cst_32 {dimension_numbers = #tpu.dot_dimension_numbers<[1], [0], [0], [1], [0, 0, 1, 1], [], []>} : vector<8x32xbf16>, vector<32x128xbf16>, vector<8x128xf32> -> vector<8x128xf32>
    %88 = arith.addf %85, %87 : vector<8x128xf32>
    %89 = math.tanh %88 : vector<8x128xf32>
    %90 = arith.mulf %89, %18 : vector<8x128xf32>
    %91 = arith.addf %90, %21 : vector<8x128xf32>
    %92 = vector.extract_strided_slice %91 {offsets = [0, 0], sizes = [8, 32], strides = [1, 1]} : vector<8x128xf32> to vector<8x32xf32>
    %93 = vector.extract_strided_slice %91 {offsets = [0, 32], sizes = [8, 32], strides = [1, 1]} : vector<8x128xf32> to vector<8x32xf32>
    %94 = vector.extract_strided_slice %91 {offsets = [0, 64], sizes = [8, 32], strides = [1, 1]} : vector<8x128xf32> to vector<8x32xf32>
    %95 = vector.extract_strided_slice %91 {offsets = [0, 96], sizes = [8, 32], strides = [1, 1]} : vector<8x128xf32> to vector<8x32xf32>
    %96 = arith.mulf %93, %80 : vector<8x32xf32>
    %97 = arith.mulf %92, %94 : vector<8x32xf32>
    %98 = arith.addf %96, %97 : vector<8x32xf32>
    %99 = math.tanh %98 : vector<8x32xf32>
    %100 = arith.mulf %95, %99 : vector<8x32xf32>
    %101 = arith.truncf %100 : vector<8x32xf32> to vector<8x32xbf16>
    %c24_33 = arith.constant 24 : index
    %c0_34 = arith.constant 0 : index
    %102 = vector.load %arg11[%c24_33, %c0_34] : memref<64x32xbf16, #tpu.memory_space<vmem>>, vector<8x32xbf16>
    tpu.vector_store %arg11[%c24_33, %c0_34], %101 {strides = array<i32>} : memref<64x32xbf16, #tpu.memory_space<vmem>>, vector<8x32xbf16>,
    %c32 = arith.constant 32 : index
    %c0_35 = arith.constant 0 : index
    %103 = vector.load %arg12[%c32, %c0_35] : memref<64x128xf32, #tpu.memory_space<vmem>>, vector<8x128xf32>
    %104 = arith.truncf %100 : vector<8x32xf32> to vector<8x32xbf16>
    %cst_36 = arith.constant dense<0.000000e+00> : vector<8x128xf32>
    %105 = tpu.matmul %104, %23, %cst_36 {dimension_numbers = #tpu.dot_dimension_numbers<[1], [0], [0], [1], [0, 0, 1, 1], [], []>} : vector<8x32xbf16>, vector<32x128xbf16>, vector<8x128xf32> -> vector<8x128xf32>
    %106 = arith.addf %103, %105 : vector<8x128xf32>
    %107 = math.tanh %106 : vector<8x128xf32>
    %108 = arith.mulf %107, %18 : vector<8x128xf32>
    %109 = arith.addf %108, %21 : vector<8x128xf32>
    %110 = vector.extract_strided_slice %109 {offsets = [0, 0], sizes = [8, 32], strides = [1, 1]} : vector<8x128xf32> to vector<8x32xf32>
    %111 = vector.extract_strided_slice %109 {offsets = [0, 32], sizes = [8, 32], strides = [1, 1]} : vector<8x128xf32> to vector<8x32xf32>
    %112 = vector.extract_strided_slice %109 {offsets = [0, 64], sizes = [8, 32], strides = [1, 1]} : vector<8x128xf32> to vector<8x32xf32>
    %113 = vector.extract_strided_slice %109 {offsets = [0, 96], sizes = [8, 32], strides = [1, 1]} : vector<8x128xf32> to vector<8x32xf32>
    %114 = arith.mulf %111, %98 : vector<8x32xf32>
    %115 = arith.mulf %110, %112 : vector<8x32xf32>
    %116 = arith.addf %114, %115 : vector<8x32xf32>
    %117 = math.tanh %116 : vector<8x32xf32>
    %118 = arith.mulf %113, %117 : vector<8x32xf32>
    %119 = arith.truncf %118 : vector<8x32xf32> to vector<8x32xbf16>
    %c32_37 = arith.constant 32 : index
    %c0_38 = arith.constant 0 : index
    %120 = vector.load %arg11[%c32_37, %c0_38] : memref<64x32xbf16, #tpu.memory_space<vmem>>, vector<8x32xbf16>
    tpu.vector_store %arg11[%c32_37, %c0_38], %119 {strides = array<i32>} : memref<64x32xbf16, #tpu.memory_space<vmem>>, vector<8x32xbf16>,
    %c40 = arith.constant 40 : index
    %c0_39 = arith.constant 0 : index
    %121 = vector.load %arg12[%c40, %c0_39] : memref<64x128xf32, #tpu.memory_space<vmem>>, vector<8x128xf32>
    %122 = arith.truncf %118 : vector<8x32xf32> to vector<8x32xbf16>
    %cst_40 = arith.constant dense<0.000000e+00> : vector<8x128xf32>
    %123 = tpu.matmul %122, %23, %cst_40 {dimension_numbers = #tpu.dot_dimension_numbers<[1], [0], [0], [1], [0, 0, 1, 1], [], []>} : vector<8x32xbf16>, vector<32x128xbf16>, vector<8x128xf32> -> vector<8x128xf32>
    %124 = arith.addf %121, %123 : vector<8x128xf32>
    %125 = math.tanh %124 : vector<8x128xf32>
    %126 = arith.mulf %125, %18 : vector<8x128xf32>
    %127 = arith.addf %126, %21 : vector<8x128xf32>
    %128 = vector.extract_strided_slice %127 {offsets = [0, 0], sizes = [8, 32], strides = [1, 1]} : vector<8x128xf32> to vector<8x32xf32>
    %129 = vector.extract_strided_slice %127 {offsets = [0, 32], sizes = [8, 32], strides = [1, 1]} : vector<8x128xf32> to vector<8x32xf32>
    %130 = vector.extract_strided_slice %127 {offsets = [0, 64], sizes = [8, 32], strides = [1, 1]} : vector<8x128xf32> to vector<8x32xf32>
    %131 = vector.extract_strided_slice %127 {offsets = [0, 96], sizes = [8, 32], strides = [1, 1]} : vector<8x128xf32> to vector<8x32xf32>
    %132 = arith.mulf %129, %116 : vector<8x32xf32>
    %133 = arith.mulf %128, %130 : vector<8x32xf32>
    %134 = arith.addf %132, %133 : vector<8x32xf32>
    %135 = math.tanh %134 : vector<8x32xf32>
    %136 = arith.mulf %131, %135 : vector<8x32xf32>
    %137 = arith.truncf %136 : vector<8x32xf32> to vector<8x32xbf16>
    %c40_41 = arith.constant 40 : index
    %c0_42 = arith.constant 0 : index
    %138 = vector.load %arg11[%c40_41, %c0_42] : memref<64x32xbf16, #tpu.memory_space<vmem>>, vector<8x32xbf16>
    tpu.vector_store %arg11[%c40_41, %c0_42], %137 {strides = array<i32>} : memref<64x32xbf16, #tpu.memory_space<vmem>>, vector<8x32xbf16>,
    %c48 = arith.constant 48 : index
    %c0_43 = arith.constant 0 : index
    %139 = vector.load %arg12[%c48, %c0_43] : memref<64x128xf32, #tpu.memory_space<vmem>>, vector<8x128xf32>
    %140 = arith.truncf %136 : vector<8x32xf32> to vector<8x32xbf16>
    %cst_44 = arith.constant dense<0.000000e+00> : vector<8x128xf32>
    %141 = tpu.matmul %140, %23, %cst_44 {dimension_numbers = #tpu.dot_dimension_numbers<[1], [0], [0], [1], [0, 0, 1, 1], [], []>} : vector<8x32xbf16>, vector<32x128xbf16>, vector<8x128xf32> -> vector<8x128xf32>
    %142 = arith.addf %139, %141 : vector<8x128xf32>
    %143 = math.tanh %142 : vector<8x128xf32>
    %144 = arith.mulf %143, %18 : vector<8x128xf32>
    %145 = arith.addf %144, %21 : vector<8x128xf32>
    %146 = vector.extract_strided_slice %145 {offsets = [0, 0], sizes = [8, 32], strides = [1, 1]} : vector<8x128xf32> to vector<8x32xf32>
    %147 = vector.extract_strided_slice %145 {offsets = [0, 32], sizes = [8, 32], strides = [1, 1]} : vector<8x128xf32> to vector<8x32xf32>
    %148 = vector.extract_strided_slice %145 {offsets = [0, 64], sizes = [8, 32], strides = [1, 1]} : vector<8x128xf32> to vector<8x32xf32>
    %149 = vector.extract_strided_slice %145 {offsets = [0, 96], sizes = [8, 32], strides = [1, 1]} : vector<8x128xf32> to vector<8x32xf32>
    %150 = arith.mulf %147, %134 : vector<8x32xf32>
    %151 = arith.mulf %146, %148 : vector<8x32xf32>
    %152 = arith.addf %150, %151 : vector<8x32xf32>
    %153 = math.tanh %152 : vector<8x32xf32>
    %154 = arith.mulf %149, %153 : vector<8x32xf32>
    %155 = arith.truncf %154 : vector<8x32xf32> to vector<8x32xbf16>
    %c48_45 = arith.constant 48 : index
    %c0_46 = arith.constant 0 : index
    %156 = vector.load %arg11[%c48_45, %c0_46] : memref<64x32xbf16, #tpu.memory_space<vmem>>, vector<8x32xbf16>
    tpu.vector_store %arg11[%c48_45, %c0_46], %155 {strides = array<i32>} : memref<64x32xbf16, #tpu.memory_space<vmem>>, vector<8x32xbf16>,
    %c56 = arith.constant 56 : index
    %c0_47 = arith.constant 0 : index
    %157 = vector.load %arg12[%c56, %c0_47] : memref<64x128xf32, #tpu.memory_space<vmem>>, vector<8x128xf32>
    %158 = arith.truncf %154 : vector<8x32xf32> to vector<8x32xbf16>
    %cst_48 = arith.constant dense<0.000000e+00> : vector<8x128xf32>
    %159 = tpu.matmul %158, %23, %cst_48 {dimension_numbers = #tpu.dot_dimension_numbers<[1], [0], [0], [1], [0, 0, 1, 1], [], []>} : vector<8x32xbf16>, vector<32x128xbf16>, vector<8x128xf32> -> vector<8x128xf32>
    %160 = arith.addf %157, %159 : vector<8x128xf32>
    %161 = math.tanh %160 : vector<8x128xf32>
    %162 = arith.mulf %161, %18 : vector<8x128xf32>
    %163 = arith.addf %162, %21 : vector<8x128xf32>
    %164 = vector.extract_strided_slice %163 {offsets = [0, 0], sizes = [8, 32], strides = [1, 1]} : vector<8x128xf32> to vector<8x32xf32>
    %165 = vector.extract_strided_slice %163 {offsets = [0, 32], sizes = [8, 32], strides = [1, 1]} : vector<8x128xf32> to vector<8x32xf32>
    %166 = vector.extract_strided_slice %163 {offsets = [0, 64], sizes = [8, 32], strides = [1, 1]} : vector<8x128xf32> to vector<8x32xf32>
    %167 = vector.extract_strided_slice %163 {offsets = [0, 96], sizes = [8, 32], strides = [1, 1]} : vector<8x128xf32> to vector<8x32xf32>
    %168 = arith.mulf %165, %152 : vector<8x32xf32>
    %169 = arith.mulf %164, %166 : vector<8x32xf32>
    %170 = arith.addf %168, %169 : vector<8x32xf32>
    %171 = math.tanh %170 : vector<8x32xf32>
    %172 = arith.mulf %167, %171 : vector<8x32xf32>
    %173 = arith.truncf %172 : vector<8x32xf32> to vector<8x32xbf16>
    %c56_49 = arith.constant 56 : index
    %c0_50 = arith.constant 0 : index
    %174 = vector.load %arg11[%c56_49, %c0_50] : memref<64x32xbf16, #tpu.memory_space<vmem>>, vector<8x32xbf16>
    tpu.vector_store %arg11[%c56_49, %c0_50], %173 {strides = array<i32>} : memref<64x32xbf16, #tpu.memory_space<vmem>>, vector<8x32xbf16>,
    %c0_51 = arith.constant 0 : index
    %c0_52 = arith.constant 0 : index
    %175 = vector.load %arg5[%c0_51, %c0_52] : memref<32x128xbf16, #tpu.memory_space<vmem>>, vector<32x128xbf16>
    %c0_53 = arith.constant 0 : index
    %c0_54 = arith.constant 0 : index
    %176 = vector.load %arg6[%c0_53, %c0_54] : memref<32x128xbf16, #tpu.memory_space<vmem>>, vector<32x128xbf16>
    %c0_55 = arith.constant 0 : index
    %c0_56 = arith.constant 0 : index
    %177 = vector.load %arg7[%c0_55, %c0_56] : memref<1x128xf32, #tpu.memory_space<vmem>>, vector<1x128xf32>
    %c0_57 = arith.constant 0 : index
    %c0_58 = arith.constant 0 : index
    %178 = vector.load %arg11[%c0_57, %c0_58] : memref<64x32xbf16, #tpu.memory_space<vmem>>, vector<64x32xbf16>
    %cst_59 = arith.constant dense<0.000000e+00> : vector<64x128xf32>
    %179 = tpu.matmul %178, %175, %cst_59 {dimension_numbers = #tpu.dot_dimension_numbers<[1], [0], [0], [1], [0, 0, 1, 1], [], []>} : vector<64x32xbf16>, vector<32x128xbf16>, vector<64x128xf32> -> vector<64x128xf32>
    %180 = vector.broadcast %177 : vector<1x128xf32> to vector<64x128xf32>
    %181 = arith.addf %179, %180 : vector<64x128xf32>
    %c0_60 = arith.constant 0 : index
    %c0_61 = arith.constant 0 : index
    %182 = vector.load %arg12[%c0_60, %c0_61] : memref<64x128xf32, #tpu.memory_space<vmem>>, vector<64x128xf32>
    tpu.vector_store %arg12[%c0_60, %c0_61], %181 {strides = array<i32>} : memref<64x128xf32, #tpu.memory_space<vmem>>, vector<64x128xf32>,
    %cst_62 = arith.constant 0.000000e+00 : f32
    %183 = vector.broadcast %cst_62 : f32 to vector<8x32xf32>
    %cst_63 = arith.constant 0.000000e+00 : f32
    %184 = vector.broadcast %cst_63 : f32 to vector<8x32xf32>
    %c0_64 = arith.constant 0 : index
    %c0_65 = arith.constant 0 : index
    %185 = vector.load %arg12[%c0_64, %c0_65] : memref<64x128xf32, #tpu.memory_space<vmem>>, vector<8x128xf32>
    %186 = arith.truncf %183 : vector<8x32xf32> to vector<8x32xbf16>
    %cst_66 = arith.constant dense<0.000000e+00> : vector<8x128xf32>
    %187 = tpu.matmul %186, %176, %cst_66 {dimension_numbers = #tpu.dot_dimension_numbers<[1], [0], [0], [1], [0, 0, 1, 1], [], []>} : vector<8x32xbf16>, vector<32x128xbf16>, vector<8x128xf32> -> vector<8x128xf32>
    %188 = arith.addf %185, %187 : vector<8x128xf32>
    %189 = math.tanh %188 : vector<8x128xf32>
    %190 = arith.mulf %189, %18 : vector<8x128xf32>
    %191 = arith.addf %190, %21 : vector<8x128xf32>
    %192 = vector.extract_strided_slice %191 {offsets = [0, 0], sizes = [8, 32], strides = [1, 1]} : vector<8x128xf32> to vector<8x32xf32>
    %193 = vector.extract_strided_slice %191 {offsets = [0, 32], sizes = [8, 32], strides = [1, 1]} : vector<8x128xf32> to vector<8x32xf32>
    %194 = vector.extract_strided_slice %191 {offsets = [0, 64], sizes = [8, 32], strides = [1, 1]} : vector<8x128xf32> to vector<8x32xf32>
    %195 = vector.extract_strided_slice %191 {offsets = [0, 96], sizes = [8, 32], strides = [1, 1]} : vector<8x128xf32> to vector<8x32xf32>
    %196 = arith.mulf %193, %184 : vector<8x32xf32>
    %197 = arith.mulf %192, %194 : vector<8x32xf32>
    %198 = arith.addf %196, %197 : vector<8x32xf32>
    %199 = math.tanh %198 : vector<8x32xf32>
    %200 = arith.mulf %195, %199 : vector<8x32xf32>
    %c8_67 = arith.constant 8 : index
    %c0_68 = arith.constant 0 : index
    %201 = vector.load %arg12[%c8_67, %c0_68] : memref<64x128xf32, #tpu.memory_space<vmem>>, vector<8x128xf32>
    %202 = arith.truncf %200 : vector<8x32xf32> to vector<8x32xbf16>
    %cst_69 = arith.constant dense<0.000000e+00> : vector<8x128xf32>
    %203 = tpu.matmul %202, %176, %cst_69 {dimension_numbers = #tpu.dot_dimension_numbers<[1], [0], [0], [1], [0, 0, 1, 1], [], []>} : vector<8x32xbf16>, vector<32x128xbf16>, vector<8x128xf32> -> vector<8x128xf32>
    %204 = arith.addf %201, %203 : vector<8x128xf32>
    %205 = math.tanh %204 : vector<8x128xf32>
    %206 = arith.mulf %205, %18 : vector<8x128xf32>
    %207 = arith.addf %206, %21 : vector<8x128xf32>
    %208 = vector.extract_strided_slice %207 {offsets = [0, 0], sizes = [8, 32], strides = [1, 1]} : vector<8x128xf32> to vector<8x32xf32>
    %209 = vector.extract_strided_slice %207 {offsets = [0, 32], sizes = [8, 32], strides = [1, 1]} : vector<8x128xf32> to vector<8x32xf32>
    %210 = vector.extract_strided_slice %207 {offsets = [0, 64], sizes = [8, 32], strides = [1, 1]} : vector<8x128xf32> to vector<8x32xf32>
    %211 = vector.extract_strided_slice %207 {offsets = [0, 96], sizes = [8, 32], strides = [1, 1]} : vector<8x128xf32> to vector<8x32xf32>
    %212 = arith.mulf %209, %198 : vector<8x32xf32>
    %213 = arith.mulf %208, %210 : vector<8x32xf32>
    %214 = arith.addf %212, %213 : vector<8x32xf32>
    %215 = math.tanh %214 : vector<8x32xf32>
    %216 = arith.mulf %211, %215 : vector<8x32xf32>
    %c16_70 = arith.constant 16 : index
    %c0_71 = arith.constant 0 : index
    %217 = vector.load %arg12[%c16_70, %c0_71] : memref<64x128xf32, #tpu.memory_space<vmem>>, vector<8x128xf32>
    %218 = arith.truncf %216 : vector<8x32xf32> to vector<8x32xbf16>
    %cst_72 = arith.constant dense<0.000000e+00> : vector<8x128xf32>
    %219 = tpu.matmul %218, %176, %cst_72 {dimension_numbers = #tpu.dot_dimension_numbers<[1], [0], [0], [1], [0, 0, 1, 1], [], []>} : vector<8x32xbf16>, vector<32x128xbf16>, vector<8x128xf32> -> vector<8x128xf32>
    %220 = arith.addf %217, %219 : vector<8x128xf32>
    %221 = math.tanh %220 : vector<8x128xf32>
    %222 = arith.mulf %221, %18 : vector<8x128xf32>
    %223 = arith.addf %222, %21 : vector<8x128xf32>
    %224 = vector.extract_strided_slice %223 {offsets = [0, 0], sizes = [8, 32], strides = [1, 1]} : vector<8x128xf32> to vector<8x32xf32>
    %225 = vector.extract_strided_slice %223 {offsets = [0, 32], sizes = [8, 32], strides = [1, 1]} : vector<8x128xf32> to vector<8x32xf32>
    %226 = vector.extract_strided_slice %223 {offsets = [0, 64], sizes = [8, 32], strides = [1, 1]} : vector<8x128xf32> to vector<8x32xf32>
    %227 = vector.extract_strided_slice %223 {offsets = [0, 96], sizes = [8, 32], strides = [1, 1]} : vector<8x128xf32> to vector<8x32xf32>
    %228 = arith.mulf %225, %214 : vector<8x32xf32>
    %229 = arith.mulf %224, %226 : vector<8x32xf32>
    %230 = arith.addf %228, %229 : vector<8x32xf32>
    %231 = math.tanh %230 : vector<8x32xf32>
    %232 = arith.mulf %227, %231 : vector<8x32xf32>
    %c24_73 = arith.constant 24 : index
    %c0_74 = arith.constant 0 : index
    %233 = vector.load %arg12[%c24_73, %c0_74] : memref<64x128xf32, #tpu.memory_space<vmem>>, vector<8x128xf32>
    %234 = arith.truncf %232 : vector<8x32xf32> to vector<8x32xbf16>
    %cst_75 = arith.constant dense<0.000000e+00> : vector<8x128xf32>
    %235 = tpu.matmul %234, %176, %cst_75 {dimension_numbers = #tpu.dot_dimension_numbers<[1], [0], [0], [1], [0, 0, 1, 1], [], []>} : vector<8x32xbf16>, vector<32x128xbf16>, vector<8x128xf32> -> vector<8x128xf32>
    %236 = arith.addf %233, %235 : vector<8x128xf32>
    %237 = math.tanh %236 : vector<8x128xf32>
    %238 = arith.mulf %237, %18 : vector<8x128xf32>
    %239 = arith.addf %238, %21 : vector<8x128xf32>
    %240 = vector.extract_strided_slice %239 {offsets = [0, 0], sizes = [8, 32], strides = [1, 1]} : vector<8x128xf32> to vector<8x32xf32>
    %241 = vector.extract_strided_slice %239 {offsets = [0, 32], sizes = [8, 32], strides = [1, 1]} : vector<8x128xf32> to vector<8x32xf32>
    %242 = vector.extract_strided_slice %239 {offsets = [0, 64], sizes = [8, 32], strides = [1, 1]} : vector<8x128xf32> to vector<8x32xf32>
    %243 = vector.extract_strided_slice %239 {offsets = [0, 96], sizes = [8, 32], strides = [1, 1]} : vector<8x128xf32> to vector<8x32xf32>
    %244 = arith.mulf %241, %230 : vector<8x32xf32>
    %245 = arith.mulf %240, %242 : vector<8x32xf32>
    %246 = arith.addf %244, %245 : vector<8x32xf32>
    %247 = math.tanh %246 : vector<8x32xf32>
    %248 = arith.mulf %243, %247 : vector<8x32xf32>
    %c32_76 = arith.constant 32 : index
    %c0_77 = arith.constant 0 : index
    %249 = vector.load %arg12[%c32_76, %c0_77] : memref<64x128xf32, #tpu.memory_space<vmem>>, vector<8x128xf32>
    %250 = arith.truncf %248 : vector<8x32xf32> to vector<8x32xbf16>
    %cst_78 = arith.constant dense<0.000000e+00> : vector<8x128xf32>
    %251 = tpu.matmul %250, %176, %cst_78 {dimension_numbers = #tpu.dot_dimension_numbers<[1], [0], [0], [1], [0, 0, 1, 1], [], []>} : vector<8x32xbf16>, vector<32x128xbf16>, vector<8x128xf32> -> vector<8x128xf32>
    %252 = arith.addf %249, %251 : vector<8x128xf32>
    %253 = math.tanh %252 : vector<8x128xf32>
    %254 = arith.mulf %253, %18 : vector<8x128xf32>
    %255 = arith.addf %254, %21 : vector<8x128xf32>
    %256 = vector.extract_strided_slice %255 {offsets = [0, 0], sizes = [8, 32], strides = [1, 1]} : vector<8x128xf32> to vector<8x32xf32>
    %257 = vector.extract_strided_slice %255 {offsets = [0, 32], sizes = [8, 32], strides = [1, 1]} : vector<8x128xf32> to vector<8x32xf32>
    %258 = vector.extract_strided_slice %255 {offsets = [0, 64], sizes = [8, 32], strides = [1, 1]} : vector<8x128xf32> to vector<8x32xf32>
    %259 = vector.extract_strided_slice %255 {offsets = [0, 96], sizes = [8, 32], strides = [1, 1]} : vector<8x128xf32> to vector<8x32xf32>
    %260 = arith.mulf %257, %246 : vector<8x32xf32>
    %261 = arith.mulf %256, %258 : vector<8x32xf32>
    %262 = arith.addf %260, %261 : vector<8x32xf32>
    %263 = math.tanh %262 : vector<8x32xf32>
    %264 = arith.mulf %259, %263 : vector<8x32xf32>
    %c40_79 = arith.constant 40 : index
    %c0_80 = arith.constant 0 : index
    %265 = vector.load %arg12[%c40_79, %c0_80] : memref<64x128xf32, #tpu.memory_space<vmem>>, vector<8x128xf32>
    %266 = arith.truncf %264 : vector<8x32xf32> to vector<8x32xbf16>
    %cst_81 = arith.constant dense<0.000000e+00> : vector<8x128xf32>
    %267 = tpu.matmul %266, %176, %cst_81 {dimension_numbers = #tpu.dot_dimension_numbers<[1], [0], [0], [1], [0, 0, 1, 1], [], []>} : vector<8x32xbf16>, vector<32x128xbf16>, vector<8x128xf32> -> vector<8x128xf32>
    %268 = arith.addf %265, %267 : vector<8x128xf32>
    %269 = math.tanh %268 : vector<8x128xf32>
    %270 = arith.mulf %269, %18 : vector<8x128xf32>
    %271 = arith.addf %270, %21 : vector<8x128xf32>
    %272 = vector.extract_strided_slice %271 {offsets = [0, 0], sizes = [8, 32], strides = [1, 1]} : vector<8x128xf32> to vector<8x32xf32>
    %273 = vector.extract_strided_slice %271 {offsets = [0, 32], sizes = [8, 32], strides = [1, 1]} : vector<8x128xf32> to vector<8x32xf32>
    %274 = vector.extract_strided_slice %271 {offsets = [0, 64], sizes = [8, 32], strides = [1, 1]} : vector<8x128xf32> to vector<8x32xf32>
    %275 = vector.extract_strided_slice %271 {offsets = [0, 96], sizes = [8, 32], strides = [1, 1]} : vector<8x128xf32> to vector<8x32xf32>
    %276 = arith.mulf %273, %262 : vector<8x32xf32>
    %277 = arith.mulf %272, %274 : vector<8x32xf32>
    %278 = arith.addf %276, %277 : vector<8x32xf32>
    %279 = math.tanh %278 : vector<8x32xf32>
    %280 = arith.mulf %275, %279 : vector<8x32xf32>
    %c48_82 = arith.constant 48 : index
    %c0_83 = arith.constant 0 : index
    %281 = vector.load %arg12[%c48_82, %c0_83] : memref<64x128xf32, #tpu.memory_space<vmem>>, vector<8x128xf32>
    %282 = arith.truncf %280 : vector<8x32xf32> to vector<8x32xbf16>
    %cst_84 = arith.constant dense<0.000000e+00> : vector<8x128xf32>
    %283 = tpu.matmul %282, %176, %cst_84 {dimension_numbers = #tpu.dot_dimension_numbers<[1], [0], [0], [1], [0, 0, 1, 1], [], []>} : vector<8x32xbf16>, vector<32x128xbf16>, vector<8x128xf32> -> vector<8x128xf32>
    %284 = arith.addf %281, %283 : vector<8x128xf32>
    %285 = math.tanh %284 : vector<8x128xf32>
    %286 = arith.mulf %285, %18 : vector<8x128xf32>
    %287 = arith.addf %286, %21 : vector<8x128xf32>
    %288 = vector.extract_strided_slice %287 {offsets = [0, 0], sizes = [8, 32], strides = [1, 1]} : vector<8x128xf32> to vector<8x32xf32>
    %289 = vector.extract_strided_slice %287 {offsets = [0, 32], sizes = [8, 32], strides = [1, 1]} : vector<8x128xf32> to vector<8x32xf32>
    %290 = vector.extract_strided_slice %287 {offsets = [0, 64], sizes = [8, 32], strides = [1, 1]} : vector<8x128xf32> to vector<8x32xf32>
    %291 = vector.extract_strided_slice %287 {offsets = [0, 96], sizes = [8, 32], strides = [1, 1]} : vector<8x128xf32> to vector<8x32xf32>
    %292 = arith.mulf %289, %278 : vector<8x32xf32>
    %293 = arith.mulf %288, %290 : vector<8x32xf32>
    %294 = arith.addf %292, %293 : vector<8x32xf32>
    %295 = math.tanh %294 : vector<8x32xf32>
    %296 = arith.mulf %291, %295 : vector<8x32xf32>
    %c56_85 = arith.constant 56 : index
    %c0_86 = arith.constant 0 : index
    %297 = vector.load %arg12[%c56_85, %c0_86] : memref<64x128xf32, #tpu.memory_space<vmem>>, vector<8x128xf32>
    %298 = arith.truncf %296 : vector<8x32xf32> to vector<8x32xbf16>
    %cst_87 = arith.constant dense<0.000000e+00> : vector<8x128xf32>
    %299 = tpu.matmul %298, %176, %cst_87 {dimension_numbers = #tpu.dot_dimension_numbers<[1], [0], [0], [1], [0, 0, 1, 1], [], []>} : vector<8x32xbf16>, vector<32x128xbf16>, vector<8x128xf32> -> vector<8x128xf32>
    %300 = arith.addf %297, %299 : vector<8x128xf32>
    %301 = math.tanh %300 : vector<8x128xf32>
    %302 = arith.mulf %301, %18 : vector<8x128xf32>
    %303 = arith.addf %302, %21 : vector<8x128xf32>
    %304 = vector.extract_strided_slice %303 {offsets = [0, 0], sizes = [8, 32], strides = [1, 1]} : vector<8x128xf32> to vector<8x32xf32>
    %305 = vector.extract_strided_slice %303 {offsets = [0, 32], sizes = [8, 32], strides = [1, 1]} : vector<8x128xf32> to vector<8x32xf32>
    %306 = vector.extract_strided_slice %303 {offsets = [0, 64], sizes = [8, 32], strides = [1, 1]} : vector<8x128xf32> to vector<8x32xf32>
    %307 = vector.extract_strided_slice %303 {offsets = [0, 96], sizes = [8, 32], strides = [1, 1]} : vector<8x128xf32> to vector<8x32xf32>
    %308 = arith.mulf %305, %294 : vector<8x32xf32>
    %309 = arith.mulf %304, %306 : vector<8x32xf32>
    %310 = arith.addf %308, %309 : vector<8x32xf32>
    %311 = math.tanh %310 : vector<8x32xf32>
    %312 = arith.mulf %307, %311 : vector<8x32xf32>
    %313 = arith.truncf %312 : vector<8x32xf32> to vector<8x32xbf16>
    %c0_88 = arith.constant 0 : index
    %c0_89 = arith.constant 0 : index
    %314 = vector.load %arg8[%c0_88, %c0_89] : memref<32x4xbf16, #tpu.memory_space<vmem>>, vector<32x4xbf16>
    %cst_90 = arith.constant dense<0.000000e+00> : vector<8x4xf32>
    %315 = tpu.matmul %313, %314, %cst_90 {dimension_numbers = #tpu.dot_dimension_numbers<[1], [0], [0], [1], [0, 0, 1, 1], [], []>} : vector<8x32xbf16>, vector<32x4xbf16>, vector<8x4xf32> -> vector<8x4xf32>
    %c0_91 = arith.constant 0 : index
    %c0_92 = arith.constant 0 : index
    %316 = vector.load %arg9[%c0_91, %c0_92] : memref<1x4xf32, #tpu.memory_space<vmem>>, vector<1x4xf32>
    %317 = vector.broadcast %316 : vector<1x4xf32> to vector<8x4xf32>
    %318 = arith.addf %315, %317 : vector<8x4xf32>
    %c0_93 = arith.constant 0 : index
    %c0_94 = arith.constant 0 : index
    %319 = vector.load %arg10[%c0_93, %c0_94] : memref<8x4xf32, #tpu.memory_space<vmem>>, vector<8x4xf32>
    tpu.vector_store %arg10[%c0_93, %c0_94], %318 {strides = array<i32>} : memref<8x4xf32, #tpu.memory_space<vmem>>, vector<8x4xf32>,
    return
  }
}

</mosaic_0001>

<llo_original>
// kernel: _forward_impl.1
$region0: #{_forward_impl.1}
  #allocation0 [shape = 'u32[]', space=smem, size = 0x4, offset = 0x4, fixed_abs, tag = 'smem constant byte address 0x4 - core index']
  #allocation1 [shape = 'u32[144,128]{1,0:T(1,128)}', space=vmem, size = 0x12000, scoped, tag = 'internal scratch']
  #allocation2 [shape = 'bf16[64,32]{1,0:T(16,128)(2,1)}', space=vmem, size = 0x4000, scoped, tag = 'scratch operand']
  #allocation3 [shape = 'f32[64,128]{1,0:T(8,128)}', space=vmem, size = 0x8000, scoped, tag = 'scratch operand']
  %s0 = inlined_call_operand.vmem [shape: s32[64,1], index: 0, kind: input, shape index: {}]
  %s1 = inlined_call_operand.vmem [shape: bf16[50,32], index: 1, kind: input, shape index: {}]
  %s2 = inlined_call_operand.vmem [shape: bf16[32,128], index: 2, kind: input, shape index: {}]
  %s3 = inlined_call_operand.vmem [shape: bf16[32,128], index: 3, kind: input, shape index: {}]
  %s4 = inlined_call_operand.vmem [shape: f32[1,128], index: 4, kind: input, shape index: {}]
  %s5 = inlined_call_operand.vmem [shape: bf16[32,128], index: 5, kind: input, shape index: {}]
  %s6 = inlined_call_operand.vmem [shape: bf16[32,128], index: 6, kind: input, shape index: {}]
  %s7 = inlined_call_operand.vmem [shape: f32[1,128], index: 7, kind: input, shape index: {}]
  %s8 = inlined_call_operand.vmem [shape: bf16[32,4], index: 8, kind: input, shape index: {}]
  %s9 = inlined_call_operand.vmem [shape: f32[1,4], index: 9, kind: input, shape index: {}]
  %s10 = inlined_call_operand.vmem [shape: f32[8,4], index: 10, kind: output, shape index: {}]
  %s11 = sld [smem:[#allocation0]]
  $region50: #{_forward_impl.1} parent=0
    _
  %s13 = ssub.s32 1, %s11
  %s14 = scalar_select 0, %s13, %s11
  // Predicated region
  $region2: #{_forward_impl.1} parent=0 // pred_check
    _
  $region3: #{_forward_impl.1} parent=0 // pred_check_branch
    %16 = sbr.rel (0) target = $region5
  $region4: #{_forward_impl.1} parent=0 // pred_region
    _
  $region5: #{_forward_impl.1} parent=0 // pred_fallthru
    _
  // Predicated region
  $region6: #{_forward_impl.1} parent=0 // pred_check
    _
  $region7: #{_forward_impl.1} parent=0 // pred_check_branch
    %18 = sbr.rel (0) target = $region9
  $region8: #{_forward_impl.1} parent=0 // pred_region
    _
  $region9: #{_forward_impl.1} parent=0 // pred_fallthru
    _
  // Predicated region
  $region10: #{_forward_impl.1} parent=0 // pred_check
    _
  $region11: #{_forward_impl.1} parent=0 // pred_check_branch
    %20 = sbr.rel (0) target = $region13
  $region12: #{_forward_impl.1} parent=0 // pred_region
    _
  $region13: #{_forward_impl.1} parent=0 // pred_fallthru
    _
  // Predicated region
  $region14: #{_forward_impl.1} parent=0 // pred_check
    _
  $region15: #{_forward_impl.1} parent=0 // pred_check_branch
    %22 = sbr.rel (0) target = $region17
  $region16: #{_forward_impl.1} parent=0 // pred_region
    _
  $region17: #{_forward_impl.1} parent=0 // pred_fallthru
    _
  // Predicated region
  $region18: #{_forward_impl.1} parent=0 // pred_check
    _
  $region19: #{_forward_impl.1} parent=0 // pred_check_branch
    %24 = sbr.rel (0) target = $region21
  $region20: #{_forward_impl.1} parent=0 // pred_region
    _
  $region21: #{_forward_impl.1} parent=0 // pred_fallthru
    _
  // Predicated region
  $region22: #{_forward_impl.1} parent=0 // pred_check
    _
  $region23: #{_forward_impl.1} parent=0 // pred_check_branch
    %26 = sbr.rel (0) target = $region25
  $region24: #{_forward_impl.1} parent=0 // pred_region
    _
  $region25: #{_forward_impl.1} parent=0 // pred_fallthru
    _
  // Predicated region
  $region26: #{_forward_impl.1} parent=0 // pred_check
    _
  $region27: #{_forward_impl.1} parent=0 // pred_check_branch
    %28 = sbr.rel (0) target = $region29
  $region28: #{_forward_impl.1} parent=0 // pred_region
    _
  $region29: #{_forward_impl.1} parent=0 // pred_fallthru
    _
  // Predicated region
  $region30: #{_forward_impl.1} parent=0 // pred_check
    _
  $region31: #{_forward_impl.1} parent=0 // pred_check_branch
    %30 = sbr.rel (0) target = $region33
  $region32: #{_forward_impl.1} parent=0 // pred_region
    _
  $region33: #{_forward_impl.1} parent=0 // pred_fallthru
    _
  // Predicated region
  $region34: #{_forward_impl.1} parent=0 // pred_check
    _
  $region35: #{_forward_impl.1} parent=0 // pred_check_branch
    %32 = sbr.rel (0) target = $region37
  $region36: #{_forward_impl.1} parent=0 // pred_region
    _
  $region37: #{_forward_impl.1} parent=0 // pred_fallthru
    _
  // Predicated region
  $region38: #{_forward_impl.1} parent=0 // pred_check
    _
  $region39: #{_forward_impl.1} parent=0 // pred_check_branch
    %34 = sbr.rel (0) target = $region41
  $region40: #{_forward_impl.1} parent=0 // pred_region
    _
  $region41: #{_forward_impl.1} parent=0 // pred_fallthru
    _
  %v36 = vld [vmem:[%s0] sm:$0xff]
  %v37 = vld [vmem:[%s0 + $0x8] sm:$0xff]
  %v38 = vld [vmem:[%s0 + $0x10] sm:$0xff]
  %v39 = vld [vmem:[%s0 + $0x18] sm:$0xff]
  %v40 = vld [vmem:[%s0 + $0x20] sm:$0xff]
  %v41 = vld [vmem:[%s0 + $0x28] sm:$0xff]
  %v42 = vld [vmem:[%s0 + $0x30] sm:$0xff]
  %v43 = vld [vmem:[%s0 + $0x38] sm:$0xff]
  %v44 = vlaneseq
  %v45 = vand.u32 %v44, 127
  %46 = vset.pattern.permute.xlu0 0
  %47 = vperm.xlu0 %46, %v36
  %v48 = vpop.permute.xlu0 %47
  %49 = vset.pattern.permute.xlu0 0
  %50 = vperm.xlu0 %49, %v37
  %v51 = vpop.permute.xlu0 %50
  %52 = vset.pattern.permute.xlu0 0
  %53 = vperm.xlu0 %52, %v38
  %v54 = vpop.permute.xlu0 %53
  %55 = vset.pattern.permute.xlu0 0
  %56 = vperm.xlu0 %55, %v39
  %v57 = vpop.permute.xlu0 %56
  %58 = vset.pattern.permute.xlu0 0
  %59 = vperm.xlu0 %58, %v40
  %v60 = vpop.permute.xlu0 %59
  %61 = vset.pattern.permute.xlu0 0
  %62 = vperm.xlu0 %61, %v41
  %v63 = vpop.permute.xlu0 %62
  %64 = vset.pattern.permute.xlu0 0
  %65 = vperm.xlu0 %64, %v42
  %v66 = vpop.permute.xlu0 %65
  %67 = vset.pattern.permute.xlu0 0
  %68 = vperm.xlu0 %67, %v43
  %v69 = vpop.permute.xlu0 %68
  %vm70 = vcmp.eq.s32.totalorder %v45, %v48
  %vm71 = vcmp.eq.s32.totalorder %v45, %v51
  %vm72 = vcmp.eq.s32.totalorder %v45, %v54
  %vm73 = vcmp.eq.s32.totalorder %v45, %v57
  %vm74 = vcmp.eq.s32.totalorder %v45, %v60
  %vm75 = vcmp.eq.s32.totalorder %v45, %v63
  %vm76 = vcmp.eq.s32.totalorder %v45, %v66
  %vm77 = vcmp.eq.s32.totalorder %v45, %v69
  %v78 = vsel %vm70, 1, 0
  %v79 = vsel %vm71, 1, 0
  %v80 = vsel %vm72, 1, 0
  %v81 = vsel %vm73, 1, 0
  %v82 = vsel %vm74, 1, 0
  %v83 = vsel %vm75, 1, 0
  %v84 = vsel %vm76, 1, 0
  %v85 = vsel %vm77, 1, 0
  %v86 = vcvt.s32.f32 %v78
  %v87 = vcvt.s32.f32 %v79
  %v88 = vcvt.s32.f32 %v80
  %v89 = vcvt.s32.f32 %v81
  %v90 = vcvt.s32.f32 %v82
  %v91 = vcvt.s32.f32 %v83
  %v92 = vcvt.s32.f32 %v84
  %v93 = vcvt.s32.f32 %v85
  %v94 = vpack.c.bf16 %v87, %v86
  %v95 = vpack.c.bf16 %v89, %v88
  %v96 = vpack.c.bf16 %v91, %v90
  %v97 = vpack.c.bf16 %v93, %v92
  %v98 = vld [vmem:[%s1] sm:$0xf]
  %v99 = vld [vmem:[%s1 + $0x4] sm:$0xf]
  %v100 = vld [vmem:[%s1 + $0x8] sm:$0xf]
  %v101 = vld [vmem:[%s1 + $0xc] sm:$0xf]
  %v102 = vld [vmem:[%s1 + $0x10] sm:$0xf]
  %v103 = vld [vmem:[%s1 + $0x14] sm:$0xf]
  %v104 = vld [vmem:[%s1 + $0x18] sm:$0x1]
  %v112 = vunpack.c.l.b16 %v98
  %v113 = vunpack.c.l.b16 %v99
  %v114 = vunpack.c.l.b16 %v100
  %v115 = vunpack.c.l.b16 %v101
  %v116 = vunpack.c.l.b16 %v102
  %v117 = vunpack.c.l.b16 %v103
  %v118 = vunpack.c.l.b16 %v104
  %v119 = vpack.c.b16 %v113, %v112
  %v120 = vpack.c.b16 %v115, %v114
  %v121 = vpack.c.b16 %v117, %v116
  %v122 = vpack.c.b16 %v118, %v118
  %vm126 = vcmask 408576
  %v128 = vsel %vm126, %v94, 0
  %v131 = vsel %vm126, %v95, 0
  %v134 = vsel %vm126, %v96, 0
  %v137 = vsel %vm126, %v97, 0
  %vm139 = vcmask 1040384
  %v141 = vsel %vm139, %v122, 0
  %143 = vmatprep.subr.bf16.mxu0 0
  %144 = vmatpush1.bf16.msra.mxu0 %v119
  %145 = vmatprep.subr.bf16.mxu0 0
  %146 = vmatpush1.bf16.msra.mxu0 %v120
  %147 = vmatprep.subr.bf16.mxu0 0
  %148 = vmatpush1.bf16.msra.mxu0 %v121
  %149 = vmatprep.subr.bf16.mxu0 0
  %150 = vmatpush1.bf16.msra.mxu0 %v141
  %151 = vmatprep.subr.bf16.mxu0 0
  %152 = vmatpush1.bf16.msra.mxu0 0
  %153 = vmatprep.subr.bf16.mxu0 0
  %154 = vmatpush1.bf16.msra.mxu0 0
  %155 = vmatprep.subr.bf16.mxu0 0
  %156 = vmatpush1.bf16.msra.mxu0 0
  %157 = vmatprep.subr.bf16.mxu0 0
  %158 = vmatpush1.bf16.msra.mxu0 0
  %159 = vmatprep.subr.bf16.mxu0 0
  %160 = vmatpush1.bf16.msra.mxu0 0
  %161 = vmatprep.subr.bf16.mxu0 0
  %162 = vmatpush1.bf16.msra.mxu0 0
  %163 = vmatprep.subr.bf16.mxu0 0
  %164 = vmatpush1.bf16.msra.mxu0 0
  %165 = vmatprep.subr.bf16.mxu0 0
  %166 = vmatpush1.bf16.msra.mxu0 0
  %167 = vmatprep.subr.bf16.mxu0 0
  %168 = vmatpush1.bf16.msra.mxu0 0
  %169 = vmatprep.subr.bf16.mxu0 0
  %170 = vmatpush1.bf16.msra.mxu0 0
  %171 = vmatprep.subr.bf16.mxu0 0
  %172 = vmatpush1.bf16.msra.mxu0 0
  %173 = vmatprep.subr.bf16.mxu0 0
  %174 = vmatpush1.bf16.msra.mxu0 0
  %175 = vmatprep.mubr.bf16.mxu0 0
  %176 = vmatmul.mubr.bf16.gmra.mrb[0].mxu0 %v128
  %v177 = vpop.f32.mrb[0].mxu0
  %v178 = vadd.f32 0.0, %v177
  %v179 = vpop.f32.mrb[0].mxu0
  %v180 = vpop.f32.mrb[0].mxu0
  %v181 = vadd.f32 0.0, %v180
  %v182 = vpop.f32.mrb[0].mxu0
  %183 = vmatprep.mubr.bf16.mxu0 0
  %184 = vmatmul.mubr.bf16.gmra.mrb[0].mxu0 %v131
  %v185 = vpop.f32.mrb[0].mxu0
  %v186 = vadd.f32 0.0, %v185
  %v187 = vpop.f32.mrb[0].mxu0
  %v188 = vpop.f32.mrb[0].mxu0
  %v189 = vadd.f32 0.0, %v188
  %v190 = vpop.f32.mrb[0].mxu0
  %191 = vmatprep.mubr.bf16.mxu0 0
  %192 = vmatmul.mubr.bf16.gmra.mrb[0].mxu0 %v134
  %v193 = vpop.f32.mrb[0].mxu0
  %v194 = vadd.f32 0.0, %v193
  %v195 = vpop.f32.mrb[0].mxu0
  %v196 = vpop.f32.mrb[0].mxu0
  %v197 = vadd.f32 0.0, %v196
  %v198 = vpop.f32.mrb[0].mxu0
  %199 = vmatprep.mubr.bf16.mxu0 0
  %200 = vmatmul.mubr.bf16.gmra.mrb[0].mxu0 %v137
  %v201 = vpop.f32.mrb[0].mxu0
  %v202 = vadd.f32 0.0, %v201
  %v203 = vpop.f32.mrb[0].mxu0
  %v204 = vpop.f32.mrb[0].mxu0
  %v205 = vadd.f32 0.0, %v204
  %v206 = vpop.f32.mrb[0].mxu0
  %207 = vdwg.mxu0
  %v208 = vpack.c.bf16 %v181, %v178
  %v209 = vpack.c.bf16 %v189, %v186
  %v210 = vpack.c.bf16 %v197, %v194
  %v211 = vpack.c.bf16 %v205, %v202
  %vm212 = vcmp.ge.s32.totalorder %v45, 64
  %vm213 = vcmp.lt.s32.totalorder %v45, 96
  %vm214 = vmand %vm212, %vm213
  %v215 = vsel %vm214, 1.0, 0.5
  %v216 = vsel %vm214, 0.0, 0.5
  %v217 = vld [vmem:[%s2] sm:$0xf]
  %v218 = vld [vmem:[%s2 + $0x4] sm:$0xf]
  %v219 = vld [vmem:[%s2 + $0x8] sm:$0xf]
  %v220 = vld [vmem:[%s2 + $0xc] sm:$0xf]
  %v221 = vld [vmem:[%s3] sm:$0xf]
  %v222 = vld [vmem:[%s3 + $0x4] sm:$0xf]
  %v223 = vld [vmem:[%s3 + $0x8] sm:$0xf]
  %v224 = vld [vmem:[%s3 + $0xc] sm:$0xf]
  %v225 = vld [vmem:[%s4] sm:$0x1]
  %v227 = vlaneseq
  %v228 = vshrl.u32 %v227, 7
  %v229 = vsub.s32 0, %v228
  %v230 = vrot.slane %v225, %v229
  %v236 = vunpack.c.l.b16 %v217
  %v237 = vunpack.c.l.b16 %v218
  %v238 = vunpack.c.l.b16 %v219
  %v239 = vunpack.c.l.b16 %v220
  %v240 = vpack.c.b16 %v237, %v236
  %v241 = vpack.c.b16 %v239, %v238
  %vm244 = vcmask 261120
  %v246 = vsel %vm244, %v208, 0
  %v249 = vsel %vm244, %v209, 0
  %v252 = vsel %vm244, %v210, 0
  %v255 = vsel %vm244, %v211, 0
  %257 = vmatprep.subr.bf16.mxu0 0
  %258 = vmatpush1.bf16.msra.mxu0 %v240
  %259 = vmatprep.subr.bf16.mxu0 0
  %260 = vmatpush1.bf16.msra.mxu0 %v241
  %261 = vmatprep.subr.bf16.mxu0 0
  %262 = vmatpush1.bf16.msra.mxu0 0
  %263 = vmatprep.subr.bf16.mxu0 0
  %264 = vmatpush1.bf16.msra.mxu0 0
  %265 = vmatprep.subr.bf16.mxu0 0
  %266 = vmatpush1.bf16.msra.mxu0 0
  %267 = vmatprep.subr.bf16.mxu0 0
  %268 = vmatpush1.bf16.msra.mxu0 0
  %269 = vmatprep.subr.bf16.mxu0 0
  %270 = vmatpush1.bf16.msra.mxu0 0
  %271 = vmatprep.subr.bf16.mxu0 0
  %272 = vmatpush1.bf16.msra.mxu0 0
  %273 = vmatprep.subr.bf16.mxu0 0
  %274 = vmatpush1.bf16.msra.mxu0 0
  %275 = vmatprep.subr.bf16.mxu0 0
  %276 = vmatpush1.bf16.msra.mxu0 0
  %277 = vmatprep.subr.bf16.mxu0 0
  %278 = vmatpush1.bf16.msra.mxu0 0
  %279 = vmatprep.subr.bf16.mxu0 0
  %280 = vmatpush1.bf16.msra.mxu0 0
  %281 = vmatprep.subr.bf16.mxu0 0
  %282 = vmatpush1.bf16.msra.mxu0 0
  %283 = vmatprep.subr.bf16.mxu0 0
  %284 = vmatpush1.bf16.msra.mxu0 0
  %285 = vmatprep.subr.bf16.mxu0 0
  %286 = vmatpush1.bf16.msra.mxu0 0
  %287 = vmatprep.subr.bf16.mxu0 0
  %288 = vmatpush1.bf16.msra.mxu0 0
  %289 = vmatprep.mubr.bf16.mxu0 0
  %290 = vmatmul.mubr.bf16.gmra.mrb[0].mxu0 %v246
  %v291 = vpop.f32.mrb[0].mxu0
  %v292 = vadd.f32 %v230, %v291
  %v293 = vpop.f32.mrb[0].mxu0
  %v294 = vpop.f32.mrb[0].mxu0
  %v295 = vadd.f32 %v230, %v294
  %v296 = vpop.f32.mrb[0].mxu0
  %297 = vmatprep.mubr.bf16.mxu0 0
  %298 = vmatmul.mubr.bf16.gmra.mrb[0].mxu0 %v249
  %v299 = vpop.f32.mrb[0].mxu0
  %v300 = vadd.f32 %v230, %v299
  %v301 = vpop.f32.mrb[0].mxu0
  %v302 = vpop.f32.mrb[0].mxu0
  %v303 = vadd.f32 %v230, %v302
  %v304 = vpop.f32.mrb[0].mxu0
  %305 = vmatprep.mubr.bf16.mxu0 0
  %306 = vmatmul.mubr.bf16.gmra.mrb[0].mxu0 %v252
  %v307 = vpop.f32.mrb[0].mxu0
  %v308 = vadd.f32 %v230, %v307
  %v309 = vpop.f32.mrb[0].mxu0
  %v310 = vpop.f32.mrb[0].mxu0
  %v311 = vadd.f32 %v230, %v310
  %v312 = vpop.f32.mrb[0].mxu0
  %313 = vmatprep.mubr.bf16.mxu0 0
  %314 = vmatmul.mubr.bf16.gmra.mrb[0].mxu0 %v255
  %v315 = vpop.f32.mrb[0].mxu0
  %v316 = vadd.f32 %v230, %v315
  %v317 = vpop.f32.mrb[0].mxu0
  %v318 = vpop.f32.mrb[0].mxu0
  %v319 = vadd.f32 %v230, %v318
  %v320 = vpop.f32.mrb[0].mxu0
  %321 = vdwg.mxu0
  %322 = vst [vmem:[#allocation3] sm:$0xff] %v292
  %323 = vst [vmem:[#allocation3 + $0x8] sm:$0xff] %v295
  %324 = vst [vmem:[#allocation3 + $0x10] sm:$0xff] %v300
  %325 = vst [vmem:[#allocation3 + $0x18] sm:$0xff] %v303
  %326 = vst [vmem:[#allocation3 + $0x20] sm:$0xff] %v308
  %327 = vst [vmem:[#allocation3 + $0x28] sm:$0xff] %v311
  %328 = vst [vmem:[#allocation3 + $0x30] sm:$0xff] %v316
  %329 = vst [vmem:[#allocation3 + $0x38] sm:$0xff] %v319
  %v330 = vld [vmem:[#allocation3] sm:$0xff]
  %v335 = vunpack.c.l.b16 %v221
  %v336 = vunpack.c.l.b16 %v222
  %v337 = vunpack.c.l.b16 %v223
  %v338 = vunpack.c.l.b16 %v224
  %v339 = vpack.c.b16 %v336, %v335
  %v340 = vpack.c.b16 %v338, %v337
  %v344 = vsel %vm244, 0, 0
  %346 = vmatprep.subr.bf16.mxu0 0
  %347 = vmatpush1.bf16.msra.mxu0 %v339
  %348 = vmatprep.subr.bf16.mxu0 0
  %349 = vmatpush1.bf16.msra.mxu0 %v340
  %350 = vmatprep.subr.bf16.mxu0 0
  %351 = vmatpush1.bf16.msra.mxu0 0
  %352 = vmatprep.subr.bf16.mxu0 0
  %353 = vmatpush1.bf16.msra.mxu0 0
  %354 = vmatprep.subr.bf16.mxu0 0
  %355 = vmatpush1.bf16.msra.mxu0 0
  %356 = vmatprep.subr.bf16.mxu0 0
  %357 = vmatpush1.bf16.msra.mxu0 0
  %358 = vmatprep.subr.bf16.mxu0 0
  %359 = vmatpush1.bf16.msra.mxu0 0
  %360 = vmatprep.subr.bf16.mxu0 0
  %361 = vmatpush1.bf16.msra.mxu0 0
  %362 = vmatprep.subr.bf16.mxu0 0
  %363 = vmatpush1.bf16.msra.mxu0 0
  %364 = vmatprep.subr.bf16.mxu0 0
  %365 = vmatpush1.bf16.msra.mxu0 0
  %366 = vmatprep.subr.bf16.mxu0 0
  %367 = vmatpush1.bf16.msra.mxu0 0
  %368 = vmatprep.subr.bf16.mxu0 0
  %369 = vmatpush1.bf16.msra.mxu0 0
  %370 = vmatprep.subr.bf16.mxu0 0
  %371 = vmatpush1.bf16.msra.mxu0 0
  %372 = vmatprep.subr.bf16.mxu0 0
  %373 = vmatpush1.bf16.msra.mxu0 0
  %374 = vmatprep.subr.bf16.mxu0 0
  %375 = vmatpush1.bf16.msra.mxu0 0
  %376 = vmatprep.subr.bf16.mxu0 0
  %377 = vmatpush1.bf16.msra.mxu0 0
  %378 = vmatprep.mubr.bf16.mxu0 0
  %379 = vmatmul.mubr.bf16.gmra.mrb[0].mxu0 %v344
  %v380 = vpop.f32.mrb[0].mxu0
  %v381 = vadd.f32 0.0, %v380
  %v382 = vpop.f32.mrb[0].mxu0
  %v383 = vpop.f32.mrb[0].mxu0
  %v384 = vpop.f32.mrb[0].mxu0
  %385 = vdwg.mxu0
  %v386 = vadd.f32 %v330, %v381
  %v387 = vtanh.pop %v386
  %v388 = vmul.f32 %v387, %v215
  %v389 = vadd.f32 %v388, %v216
  %v390 = vmul.f32 %v389, 0.0
  %392 = vrot.lane.b32.xlu0 %v389, 64
  %v393 = vpop.permute.xlu0 %392
  %v395 = vmul.f32 %v389, %v393
  %397 = vrot.lane.b32.xlu0 %v395, 32
  %v398 = vpop.permute.xlu0 %397
  %v400 = vadd.f32 %v390, %v398
  %v401 = vtanh.pop %v400
  %403 = vrot.lane.b32.xlu0 %v401, 64
  %v404 = vpop.permute.xlu0 %403
  %v406 = vmul.f32 %v389, %v404
  %v407 = vpack.c.bf16 %v406, %v406
  %409 = vrot.lane.b32.xlu0 %v407, 32
  %v410 = vpop.permute.xlu0 %409
  %vm412 = vcmask 257024
  %413 = vst.msk [vmem:[#allocation2] sm:$0xf] %vm412, %v410
  %v414 = vld [vmem:[#allocation3 + $0x8] sm:$0xff]
  %v416 = vsel %vm244, %v410, 0
  %418 = vmatprep.subr.bf16.mxu0 0
  %419 = vmatpush1.bf16.msra.mxu0 %v339
  %420 = vmatprep.subr.bf16.mxu0 0
  %421 = vmatpush1.bf16.msra.mxu0 %v340
  %422 = vmatprep.subr.bf16.mxu0 0
  %423 = vmatpush1.bf16.msra.mxu0 0
  %424 = vmatprep.subr.bf16.mxu0 0
  %425 = vmatpush1.bf16.msra.mxu0 0
  %426 = vmatprep.subr.bf16.mxu0 0
  %427 = vmatpush1.bf16.msra.mxu0 0
  %428 = vmatprep.subr.bf16.mxu0 0
  %429 = vmatpush1.bf16.msra.mxu0 0
  %430 = vmatprep.subr.bf16.mxu0 0
  %431 = vmatpush1.bf16.msra.mxu0 0
  %432 = vmatprep.subr.bf16.mxu0 0
  %433 = vmatpush1.bf16.msra.mxu0 0
  %434 = vmatprep.subr.bf16.mxu0 0
  %435 = vmatpush1.bf16.msra.mxu0 0
  %436 = vmatprep.subr.bf16.mxu0 0
  %437 = vmatpush1.bf16.msra.mxu0 0
  %438 = vmatprep.subr.bf16.mxu0 0
  %439 = vmatpush1.bf16.msra.mxu0 0
  %440 = vmatprep.subr.bf16.mxu0 0
  %441 = vmatpush1.bf16.msra.mxu0 0
  %442 = vmatprep.subr.bf16.mxu0 0
  %443 = vmatpush1.bf16.msra.mxu0 0
  %444 = vmatprep.subr.bf16.mxu0 0
  %445 = vmatpush1.bf16.msra.mxu0 0
  %446 = vmatprep.subr.bf16.mxu0 0
  %447 = vmatpush1.bf16.msra.mxu0 0
  %448 = vmatprep.subr.bf16.mxu0 0
  %449 = vmatpush1.bf16.msra.mxu0 0
  %450 = vmatprep.mubr.bf16.mxu0 0
  %451 = vmatmul.mubr.bf16.gmra.mrb[0].mxu0 %v416
  %v452 = vpop.f32.mrb[0].mxu0
  %v453 = vadd.f32 0.0, %v452
  %v454 = vpop.f32.mrb[0].mxu0
  %v455 = vpop.f32.mrb[0].mxu0
  %v456 = vpop.f32.mrb[0].mxu0
  %457 = vdwg.mxu0
  %v458 = vadd.f32 %v414, %v453
  %v459 = vtanh.pop %v458
  %v460 = vmul.f32 %v459, %v215
  %v461 = vadd.f32 %v460, %v216
  %v462 = vmul.f32 %v461, %v400
  %464 = vrot.lane.b32.xlu0 %v461, 64
  %v465 = vpop.permute.xlu0 %464
  %v467 = vmul.f32 %v461, %v465
  %469 = vrot.lane.b32.xlu0 %v467, 32
  %v470 = vpop.permute.xlu0 %469
  %v472 = vadd.f32 %v462, %v470
  %v473 = vtanh.pop %v472
  %475 = vrot.lane.b32.xlu0 %v473, 64
  %v476 = vpop.permute.xlu0 %475
  %v478 = vmul.f32 %v461, %v476
  %v479 = vpack.c.bf16 %v478, %v478
  %v481 = vrot.slane %v479, 4
  %482 = vrot.lane.b32.xlu0 %v481, 32
  %v483 = vpop.permute.xlu0 %482
  %vm485 = vcmask 261124
  %486 = vst.msk [vmem:[#allocation2] sm:$0xf0] %vm485, %v483
  %v487 = vld [vmem:[#allocation3 + $0x10] sm:$0xff]
  %488 = vrot.lane.b32.xlu0 %v479, 32
  %v489 = vpop.permute.xlu0 %488
  %v491 = vsel %vm244, %v489, 0
  %493 = vmatprep.subr.bf16.mxu0 0
  %494 = vmatpush1.bf16.msra.mxu0 %v339
  %495 = vmatprep.subr.bf16.mxu0 0
  %496 = vmatpush1.bf16.msra.mxu0 %v340
  %497 = vmatprep.subr.bf16.mxu0 0
  %498 = vmatpush1.bf16.msra.mxu0 0
  %499 = vmatprep.subr.bf16.mxu0 0
  %500 = vmatpush1.bf16.msra.mxu0 0
  %501 = vmatprep.subr.bf16.mxu0 0
  %502 = vmatpush1.bf16.msra.mxu0 0
  %503 = vmatprep.subr.bf16.mxu0 0
  %504 = vmatpush1.bf16.msra.mxu0 0
  %505 = vmatprep.subr.bf16.mxu0 0
  %506 = vmatpush1.bf16.msra.mxu0 0
  %507 = vmatprep.subr.bf16.mxu0 0
  %508 = vmatpush1.bf16.msra.mxu0 0
  %509 = vmatprep.subr.bf16.mxu0 0
  %510 = vmatpush1.bf16.msra.mxu0 0
  %511 = vmatprep.subr.bf16.mxu0 0
  %512 = vmatpush1.bf16.msra.mxu0 0
  %513 = vmatprep.subr.bf16.mxu0 0
  %514 = vmatpush1.bf16.msra.mxu0 0
  %515 = vmatprep.subr.bf16.mxu0 0
  %516 = vmatpush1.bf16.msra.mxu0 0
  %517 = vmatprep.subr.bf16.mxu0 0
  %518 = vmatpush1.bf16.msra.mxu0 0
  %519 = vmatprep.subr.bf16.mxu0 0
  %520 = vmatpush1.bf16.msra.mxu0 0
  %521 = vmatprep.subr.bf16.mxu0 0
  %522 = vmatpush1.bf16.msra.mxu0 0
  %523 = vmatprep.subr.bf16.mxu0 0
  %524 = vmatpush1.bf16.msra.mxu0 0
  %525 = vmatprep.mubr.bf16.mxu0 0
  %526 = vmatmul.mubr.bf16.gmra.mrb[0].mxu0 %v491
  %v527 = vpop.f32.mrb[0].mxu0
  %v528 = vadd.f32 0.0, %v527
  %v529 = vpop.f32.mrb[0].mxu0
  %v530 = vpop.f32.mrb[0].mxu0
  %v531 = vpop.f32.mrb[0].mxu0
  %532 = vdwg.mxu0
  %v533 = vadd.f32 %v487, %v528
  %v534 = vtanh.pop %v533
  %v535 = vmul.f32 %v534, %v215
  %v536 = vadd.f32 %v535, %v216
  %v537 = vmul.f32 %v536, %v472
  %539 = vrot.lane.b32.xlu0 %v536, 64
  %v540 = vpop.permute.xlu0 %539
  %v542 = vmul.f32 %v536, %v540
  %544 = vrot.lane.b32.xlu0 %v542, 32
  %v545 = vpop.permute.xlu0 %544
  %v547 = vadd.f32 %v537, %v545
  %v548 = vtanh.pop %v547
  %550 = vrot.lane.b32.xlu0 %v548, 64
  %v551 = vpop.permute.xlu0 %550
  %v553 = vmul.f32 %v536, %v551
  %v554 = vpack.c.bf16 %v553, %v553
  %556 = vrot.lane.b32.xlu0 %v554, 32
  %v557 = vpop.permute.xlu0 %556
  %559 = vst.msk [vmem:[#allocation2 + $0x8] sm:$0xf] %vm412, %v557
  %v560 = vld [vmem:[#allocation3 + $0x18] sm:$0xff]
  %v562 = vsel %vm244, %v557, 0
  %564 = vmatprep.subr.bf16.mxu0 0
  %565 = vmatpush1.bf16.msra.mxu0 %v339
  %566 = vmatprep.subr.bf16.mxu0 0
  %567 = vmatpush1.bf16.msra.mxu0 %v340
  %568 = vmatprep.subr.bf16.mxu0 0
  %569 = vmatpush1.bf16.msra.mxu0 0
  %570 = vmatprep.subr.bf16.mxu0 0
  %571 = vmatpush1.bf16.msra.mxu0 0
  %572 = vmatprep.subr.bf16.mxu0 0
  %573 = vmatpush1.bf16.msra.mxu0 0
  %574 = vmatprep.subr.bf16.mxu0 0
  %575 = vmatpush1.bf16.msra.mxu0 0
  %576 = vmatprep.subr.bf16.mxu0 0
  %577 = vmatpush1.bf16.msra.mxu0 0
  %578 = vmatprep.subr.bf16.mxu0 0
  %579 = vmatpush1.bf16.msra.mxu0 0
  %580 = vmatprep.subr.bf16.mxu0 0
  %581 = vmatpush1.bf16.msra.mxu0 0
  %582 = vmatprep.subr.bf16.mxu0 0
  %583 = vmatpush1.bf16.msra.mxu0 0
  %584 = vmatprep.subr.bf16.mxu0 0
  %585 = vmatpush1.bf16.msra.mxu0 0
  %586 = vmatprep.subr.bf16.mxu0 0
  %587 = vmatpush1.bf16.msra.mxu0 0
  %588 = vmatprep.subr.bf16.mxu0 0
  %589 = vmatpush1.bf16.msra.mxu0 0
  %590 = vmatprep.subr.bf16.mxu0 0
  %591 = vmatpush1.bf16.msra.mxu0 0
  %592 = vmatprep.subr.bf16.mxu0 0
  %593 = vmatpush1.bf16.msra.mxu0 0
  %594 = vmatprep.subr.bf16.mxu0 0
  %595 = vmatpush1.bf16.msra.mxu0 0
  %596 = vmatprep.mubr.bf16.mxu0 0
  %597 = vmatmul.mubr.bf16.gmra.mrb[0].mxu0 %v562
  %v598 = vpop.f32.mrb[0].mxu0
  %v599 = vadd.f32 0.0, %v598
  %v600 = vpop.f32.mrb[0].mxu0
  %v601 = vpop.f32.mrb[0].mxu0
  %v602 = vpop.f32.mrb[0].mxu0
  %603 = vdwg.mxu0
  %v604 = vadd.f32 %v560, %v599
  %v605 = vtanh.pop %v604
  %v606 = vmul.f32 %v605, %v215
  %v607 = vadd.f32 %v606, %v216
  %v608 = vmul.f32 %v607, %v547
  %610 = vrot.lane.b32.xlu0 %v607, 64
  %v611 = vpop.permute.xlu0 %610
  %v613 = vmul.f32 %v607, %v611
  %615 = vrot.lane.b32.xlu0 %v613, 32
  %v616 = vpop.permute.xlu0 %615
  %v618 = vadd.f32 %v608, %v616
  %v619 = vtanh.pop %v618
  %621 = vrot.lane.b32.xlu0 %v619, 64
  %v622 = vpop.permute.xlu0 %621
  %v624 = vmul.f32 %v607, %v622
  %v625 = vpack.c.bf16 %v624, %v624
  %v627 = vrot.slane %v625, 4
  %628 = vrot.lane.b32.xlu0 %v627, 32
  %v629 = vpop.permute.xlu0 %628
  %631 = vst.msk [vmem:[#allocation2 + $0x8] sm:$0xf0] %vm485, %v629
  %v632 = vld [vmem:[#allocation3 + $0x20] sm:$0xff]
  %633 = vrot.lane.b32.xlu0 %v625, 32
  %v634 = vpop.permute.xlu0 %633
  %v636 = vsel %vm244, %v634, 0
  %638 = vmatprep.subr.bf16.mxu0 0
  %639 = vmatpush1.bf16.msra.mxu0 %v339
  %640 = vmatprep.subr.bf16.mxu0 0
  %641 = vmatpush1.bf16.msra.mxu0 %v340
  %642 = vmatprep.subr.bf16.mxu0 0
  %643 = vmatpush1.bf16.msra.mxu0 0
  %644 = vmatprep.subr.bf16.mxu0 0
  %645 = vmatpush1.bf16.msra.mxu0 0
  %646 = vmatprep.subr.bf16.mxu0 0
  %647 = vmatpush1.bf16.msra.mxu0 0
  %648 = vmatprep.subr.bf16.mxu0 0
  %649 = vmatpush1.bf16.msra.mxu0 0
  %650 = vmatprep.subr.bf16.mxu0 0
  %651 = vmatpush1.bf16.msra.mxu0 0
  %652 = vmatprep.subr.bf16.mxu0 0
  %653 = vmatpush1.bf16.msra.mxu0 0
  %654 = vmatprep.subr.bf16.mxu0 0
  %655 = vmatpush1.bf16.msra.mxu0 0
  %656 = vmatprep.subr.bf16.mxu0 0
  %657 = vmatpush1.bf16.msra.mxu0 0
  %658 = vmatprep.subr.bf16.mxu0 0
  %659 = vmatpush1.bf16.msra.mxu0 0
  %660 = vmatprep.subr.bf16.mxu0 0
  %661 = vmatpush1.bf16.msra.mxu0 0
  %662 = vmatprep.subr.bf16.mxu0 0
  %663 = vmatpush1.bf16.msra.mxu0 0
  %664 = vmatprep.subr.bf16.mxu0 0
  %665 = vmatpush1.bf16.msra.mxu0 0
  %666 = vmatprep.subr.bf16.mxu0 0
  %667 = vmatpush1.bf16.msra.mxu0 0
  %668 = vmatprep.subr.bf16.mxu0 0
  %669 = vmatpush1.bf16.msra.mxu0 0
  %670 = vmatprep.mubr.bf16.mxu0 0
  %671 = vmatmul.mubr.bf16.gmra.mrb[0].mxu0 %v636
  %v672 = vpop.f32.mrb[0].mxu0
  %v673 = vadd.f32 0.0, %v672
  %v674 = vpop.f32.mrb[0].mxu0
  %v675 = vpop.f32.mrb[0].mxu0
  %v676 = vpop.f32.mrb[0].mxu0
  %677 = vdwg.mxu0
  %v678 = vadd.f32 %v632, %v673
  %v679 = vtanh.pop %v678
  %v680 = vmul.f32 %v679, %v215
  %v681 = vadd.f32 %v680, %v216
  %v682 = vmul.f32 %v681, %v618
  %684 = vrot.lane.b32.xlu0 %v681, 64
  %v685 = vpop.permute.xlu0 %684
  %v687 = vmul.f32 %v681, %v685
  %689 = vrot.lane.b32.xlu0 %v687, 32
  %v690 = vpop.permute.xlu0 %689
  %v692 = vadd.f32 %v682, %v690
  %v693 = vtanh.pop %v692
  %695 = vrot.lane.b32.xlu0 %v693, 64
  %v696 = vpop.permute.xlu0 %695
  %v698 = vmul.f32 %v681, %v696
  %v699 = vpack.c.bf16 %v698, %v698
  %701 = vrot.lane.b32.xlu0 %v699, 32
  %v702 = vpop.permute.xlu0 %701
  %704 = vst.msk [vmem:[#allocation2 + $0x10] sm:$0xf] %vm412, %v702
  %v705 = vld [vmem:[#allocation3 + $0x28] sm:$0xff]
  %v707 = vsel %vm244, %v702, 0
  %709 = vmatprep.subr.bf16.mxu0 0
  %710 = vmatpush1.bf16.msra.mxu0 %v339
  %711 = vmatprep.subr.bf16.mxu0 0
  %712 = vmatpush1.bf16.msra.mxu0 %v340
  %713 = vmatprep.subr.bf16.mxu0 0
  %714 = vmatpush1.bf16.msra.mxu0 0
  %715 = vmatprep.subr.bf16.mxu0 0
  %716 = vmatpush1.bf16.msra.mxu0 0
  %717 = vmatprep.subr.bf16.mxu0 0
  %718 = vmatpush1.bf16.msra.mxu0 0
  %719 = vmatprep.subr.bf16.mxu0 0
  %720 = vmatpush1.bf16.msra.mxu0 0
  %721 = vmatprep.subr.bf16.mxu0 0
  %722 = vmatpush1.bf16.msra.mxu0 0
  %723 = vmatprep.subr.bf16.mxu0 0
  %724 = vmatpush1.bf16.msra.mxu0 0
  %725 = vmatprep.subr.bf16.mxu0 0
  %726 = vmatpush1.bf16.msra.mxu0 0
  %727 = vmatprep.subr.bf16.mxu0 0
  %728 = vmatpush1.bf16.msra.mxu0 0
  %729 = vmatprep.subr.bf16.mxu0 0
  %730 = vmatpush1.bf16.msra.mxu0 0
  %731 = vmatprep.subr.bf16.mxu0 0
  %732 = vmatpush1.bf16.msra.mxu0 0
  %733 = vmatprep.subr.bf16.mxu0 0
  %734 = vmatpush1.bf16.msra.mxu0 0
  %735 = vmatprep.subr.bf16.mxu0 0
  %736 = vmatpush1.bf16.msra.mxu0 0
  %737 = vmatprep.subr.bf16.mxu0 0
  %738 = vmatpush1.bf16.msra.mxu0 0
  %739 = vmatprep.subr.bf16.mxu0 0
  %740 = vmatpush1.bf16.msra.mxu0 0
  %741 = vmatprep.mubr.bf16.mxu0 0
  %742 = vmatmul.mubr.bf16.gmra.mrb[0].mxu0 %v707
  %v743 = vpop.f32.mrb[0].mxu0
  %v744 = vadd.f32 0.0, %v743
  %v745 = vpop.f32.mrb[0].mxu0
  %v746 = vpop.f32.mrb[0].mxu0
  %v747 = vpop.f32.mrb[0].mxu0
  %748 = vdwg.mxu0
  %v749 = vadd.f32 %v705, %v744
  %v750 = vtanh.pop %v749
  %v751 = vmul.f32 %v750, %v215
  %v752 = vadd.f32 %v751, %v216
  %v753 = vmul.f32 %v752, %v692
  %755 = vrot.lane.b32.xlu0 %v752, 64
  %v756 = vpop.permute.xlu0 %755
  %v758 = vmul.f32 %v752, %v756
  %760 = vrot.lane.b32.xlu0 %v758, 32
  %v761 = vpop.permute.xlu0 %760
  %v763 = vadd.f32 %v753, %v761
  %v764 = vtanh.pop %v763
  %766 = vrot.lane.b32.xlu0 %v764, 64
  %v767 = vpop.permute.xlu0 %766
  %v769 = vmul.f32 %v752, %v767
  %v770 = vpack.c.bf16 %v769, %v769
  %v772 = vrot.slane %v770, 4
  %773 = vrot.lane.b32.xlu0 %v772, 32
  %v774 = vpop.permute.xlu0 %773
  %776 = vst.msk [vmem:[#allocation2 + $0x10] sm:$0xf0] %vm485, %v774
  %v777 = vld [vmem:[#allocation3 + $0x30] sm:$0xff]
  %778 = vrot.lane.b32.xlu0 %v770, 32
  %v779 = vpop.permute.xlu0 %778
  %v781 = vsel %vm244, %v779, 0
  %783 = vmatprep.subr.bf16.mxu0 0
  %784 = vmatpush1.bf16.msra.mxu0 %v339
  %785 = vmatprep.subr.bf16.mxu0 0
  %786 = vmatpush1.bf16.msra.mxu0 %v340
  %787 = vmatprep.subr.bf16.mxu0 0
  %788 = vmatpush1.bf16.msra.mxu0 0
  %789 = vmatprep.subr.bf16.mxu0 0
  %790 = vmatpush1.bf16.msra.mxu0 0
  %791 = vmatprep.subr.bf16.mxu0 0
  %792 = vmatpush1.bf16.msra.mxu0 0
  %793 = vmatprep.subr.bf16.mxu0 0
  %794 = vmatpush1.bf16.msra.mxu0 0
  %795 = vmatprep.subr.bf16.mxu0 0
  %796 = vmatpush1.bf16.msra.mxu0 0
  %797 = vmatprep.subr.bf16.mxu0 0
  %798 = vmatpush1.bf16.msra.mxu0 0
  %799 = vmatprep.subr.bf16.mxu0 0
  %800 = vmatpush1.bf16.msra.mxu0 0
  %801 = vmatprep.subr.bf16.mxu0 0
  %802 = vmatpush1.bf16.msra.mxu0 0
  %803 = vmatprep.subr.bf16.mxu0 0
  %804 = vmatpush1.bf16.msra.mxu0 0
  %805 = vmatprep.subr.bf16.mxu0 0
  %806 = vmatpush1.bf16.msra.mxu0 0
  %807 = vmatprep.subr.bf16.mxu0 0
  %808 = vmatpush1.bf16.msra.mxu0 0
  %809 = vmatprep.subr.bf16.mxu0 0
  %810 = vmatpush1.bf16.msra.mxu0 0
  %811 = vmatprep.subr.bf16.mxu0 0
  %812 = vmatpush1.bf16.msra.mxu0 0
  %813 = vmatprep.subr.bf16.mxu0 0
  %814 = vmatpush1.bf16.msra.mxu0 0
  %815 = vmatprep.mubr.bf16.mxu0 0
  %816 = vmatmul.mubr.bf16.gmra.mrb[0].mxu0 %v781
  %v817 = vpop.f32.mrb[0].mxu0
  %v818 = vadd.f32 0.0, %v817
  %v819 = vpop.f32.mrb[0].mxu0
  %v820 = vpop.f32.mrb[0].mxu0
  %v821 = vpop.f32.mrb[0].mxu0
  %822 = vdwg.mxu0
  %v823 = vadd.f32 %v777, %v818
  %v824 = vtanh.pop %v823
  %v825 = vmul.f32 %v824, %v215
  %v826 = vadd.f32 %v825, %v216
  %v827 = vmul.f32 %v826, %v763
  %829 = vrot.lane.b32.xlu0 %v826, 64
  %v830 = vpop.permute.xlu0 %829
  %v832 = vmul.f32 %v826, %v830
  %834 = vrot.lane.b32.xlu0 %v832, 32
  %v835 = vpop.permute.xlu0 %834
  %v837 = vadd.f32 %v827, %v835
  %v838 = vtanh.pop %v837
  %840 = vrot.lane.b32.xlu0 %v838, 64
  %v841 = vpop.permute.xlu0 %840
  %v843 = vmul.f32 %v826, %v841
  %v844 = vpack.c.bf16 %v843, %v843
  %846 = vrot.lane.b32.xlu0 %v844, 32
  %v847 = vpop.permute.xlu0 %846
  %849 = vst.msk [vmem:[#allocation2 + $0x18] sm:$0xf] %vm412, %v847
  %v850 = vld [vmem:[#allocation3 + $0x38] sm:$0xff]
  %v852 = vsel %vm244, %v847, 0
  %854 = vmatprep.subr.bf16.mxu0 0
  %855 = vmatpush1.bf16.msra.mxu0 %v339
  %856 = vmatprep.subr.bf16.mxu0 0
  %857 = vmatpush1.bf16.msra.mxu0 %v340
  %858 = vmatprep.subr.bf16.mxu0 0
  %859 = vmatpush1.bf16.msra.mxu0 0
  %860 = vmatprep.subr.bf16.mxu0 0
  %861 = vmatpush1.bf16.msra.mxu0 0
  %862 = vmatprep.subr.bf16.mxu0 0
  %863 = vmatpush1.bf16.msra.mxu0 0
  %864 = vmatprep.subr.bf16.mxu0 0
  %865 = vmatpush1.bf16.msra.mxu0 0
  %866 = vmatprep.subr.bf16.mxu0 0
  %867 = vmatpush1.bf16.msra.mxu0 0
  %868 = vmatprep.subr.bf16.mxu0 0
  %869 = vmatpush1.bf16.msra.mxu0 0
  %870 = vmatprep.subr.bf16.mxu0 0
  %871 = vmatpush1.bf16.msra.mxu0 0
  %872 = vmatprep.subr.bf16.mxu0 0
  %873 = vmatpush1.bf16.msra.mxu0 0
  %874 = vmatprep.subr.bf16.mxu0 0
  %875 = vmatpush1.bf16.msra.mxu0 0
  %876 = vmatprep.subr.bf16.mxu0 0
  %877 = vmatpush1.bf16.msra.mxu0 0
  %878 = vmatprep.subr.bf16.mxu0 0
  %879 = vmatpush1.bf16.msra.mxu0 0
  %880 = vmatprep.subr.bf16.mxu0 0
  %881 = vmatpush1.bf16.msra.mxu0 0
  %882 = vmatprep.subr.bf16.mxu0 0
  %883 = vmatpush1.bf16.msra.mxu0 0
  %884 = vmatprep.subr.bf16.mxu0 0
  %885 = vmatpush1.bf16.msra.mxu0 0
  %886 = vmatprep.mubr.bf16.mxu0 0
  %887 = vmatmul.mubr.bf16.gmra.mrb[0].mxu0 %v852
  %v888 = vpop.f32.mrb[0].mxu0
  %v889 = vadd.f32 0.0, %v888
  %v890 = vpop.f32.mrb[0].mxu0
  %v891 = vpop.f32.mrb[0].mxu0
  %v892 = vpop.f32.mrb[0].mxu0
  %893 = vdwg.mxu0
  %v894 = vadd.f32 %v850, %v889
  %v895 = vtanh.pop %v894
  %v896 = vmul.f32 %v895, %v215
  %v897 = vadd.f32 %v896, %v216
  %v898 = vmul.f32 %v897, %v837
  %900 = vrot.lane.b32.xlu0 %v897, 64
  %v901 = vpop.permute.xlu0 %900
  %v903 = vmul.f32 %v897, %v901
  %905 = vrot.lane.b32.xlu0 %v903, 32
  %v906 = vpop.permute.xlu0 %905
  %v908 = vadd.f32 %v898, %v906
  %v909 = vtanh.pop %v908
  %911 = vrot.lane.b32.xlu0 %v909, 64
  %v912 = vpop.permute.xlu0 %911
  %v914 = vmul.f32 %v897, %v912
  %v915 = vpack.c.bf16 %v914, %v914
  %v917 = vrot.slane %v915, 4
  %918 = vrot.lane.b32.xlu0 %v917, 32
  %v919 = vpop.permute.xlu0 %918
  %921 = vst.msk [vmem:[#allocation2 + $0x18] sm:$0xf0] %vm485, %v919
  %v922 = vld [vmem:[%s5] sm:$0xf]
  %v923 = vld [vmem:[%s5 + $0x4] sm:$0xf]
  %v924 = vld [vmem:[%s5 + $0x8] sm:$0xf]
  %v925 = vld [vmem:[%s5 + $0xc] sm:$0xf]
  %v926 = vld [vmem:[%s6] sm:$0xf]
  %v927 = vld [vmem:[%s6 + $0x4] sm:$0xf]
  %v928 = vld [vmem:[%s6 + $0x8] sm:$0xf]
  %v929 = vld [vmem:[%s6 + $0xc] sm:$0xf]
  %v930 = vld [vmem:[%s7] sm:$0x1]
  %v931 = vld [vmem:[#allocation2] sm:$0xff]
  %v932 = vld [vmem:[#allocation2 + $0x8] sm:$0xff]
  %v933 = vld [vmem:[#allocation2 + $0x10] sm:$0xff]
  %v934 = vld [vmem:[#allocation2 + $0x18] sm:$0xff]
  %v936 = vlaneseq
  %v937 = vshrl.u32 %v936, 7
  %v938 = vsub.s32 0, %v937
  %v939 = vrot.slane %v930, %v938
  %v945 = vunpack.c.l.b16 %v922
  %v946 = vunpack.c.l.b16 %v923
  %v947 = vunpack.c.l.b16 %v924
  %v948 = vunpack.c.l.b16 %v925
  %v949 = vpack.c.b16 %v946, %v945
  %v950 = vpack.c.b16 %v948, %v947
  %v954 = vsel %vm244, %v931, 0
  %v957 = vsel %vm244, %v932, 0
  %v960 = vsel %vm244, %v933, 0
  %v963 = vsel %vm244, %v934, 0
  %965 = vmatprep.subr.bf16.mxu0 0
  %966 = vmatpush1.bf16.msra.mxu0 %v949
  %967 = vmatprep.subr.bf16.mxu0 0
  %968 = vmatpush1.bf16.msra.mxu0 %v950
  %969 = vmatprep.subr.bf16.mxu0 0
  %970 = vmatpush1.bf16.msra.mxu0 0
  %971 = vmatprep.subr.bf16.mxu0 0
  %972 = vmatpush1.bf16.msra.mxu0 0
  %973 = vmatprep.subr.bf16.mxu0 0
  %974 = vmatpush1.bf16.msra.mxu0 0
  %975 = vmatprep.subr.bf16.mxu0 0
  %976 = vmatpush1.bf16.msra.mxu0 0
  %977 = vmatprep.subr.bf16.mxu0 0
  %978 = vmatpush1.bf16.msra.mxu0 0
  %979 = vmatprep.subr.bf16.mxu0 0
  %980 = vmatpush1.bf16.msra.mxu0 0
  %981 = vmatprep.subr.bf16.mxu0 0
  %982 = vmatpush1.bf16.msra.mxu0 0
  %983 = vmatprep.subr.bf16.mxu0 0
  %984 = vmatpush1.bf16.msra.mxu0 0
  %985 = vmatprep.subr.bf16.mxu0 0
  %986 = vmatpush1.bf16.msra.mxu0 0
  %987 = vmatprep.subr.bf16.mxu0 0
  %988 = vmatpush1.bf16.msra.mxu0 0
  %989 = vmatprep.subr.bf16.mxu0 0
  %990 = vmatpush1.bf16.msra.mxu0 0
  %991 = vmatprep.subr.bf16.mxu0 0
  %992 = vmatpush1.bf16.msra.mxu0 0
  %993 = vmatprep.subr.bf16.mxu0 0
  %994 = vmatpush1.bf16.msra.mxu0 0
  %995 = vmatprep.subr.bf16.mxu0 0
  %996 = vmatpush1.bf16.msra.mxu0 0
  %997 = vmatprep.mubr.bf16.mxu0 0
  %998 = vmatmul.mubr.bf16.gmra.mrb[0].mxu0 %v954
  %v999 = vpop.f32.mrb[0].mxu0
  %v1000 = vadd.f32 %v939, %v999
  %v1001 = vpop.f32.mrb[0].mxu0
  %v1002 = vpop.f32.mrb[0].mxu0
  %v1003 = vadd.f32 %v939, %v1002
  %v1004 = vpop.f32.mrb[0].mxu0
  %1005 = vmatprep.mubr.bf16.mxu0 0
  %1006 = vmatmul.mubr.bf16.gmra.mrb[0].mxu0 %v957
  %v1007 = vpop.f32.mrb[0].mxu0
  %v1008 = vadd.f32 %v939, %v1007
  %v1009 = vpop.f32.mrb[0].mxu0
  %v1010 = vpop.f32.mrb[0].mxu0
  %v1011 = vadd.f32 %v939, %v1010
  %v1012 = vpop.f32.mrb[0].mxu0
  %1013 = vmatprep.mubr.bf16.mxu0 0
  %1014 = vmatmul.mubr.bf16.gmra.mrb[0].mxu0 %v960
  %v1015 = vpop.f32.mrb[0].mxu0
  %v1016 = vadd.f32 %v939, %v1015
  %v1017 = vpop.f32.mrb[0].mxu0
  %v1018 = vpop.f32.mrb[0].mxu0
  %v1019 = vadd.f32 %v939, %v1018
  %v1020 = vpop.f32.mrb[0].mxu0
  %1021 = vmatprep.mubr.bf16.mxu0 0
  %1022 = vmatmul.mubr.bf16.gmra.mrb[0].mxu0 %v963
  %v1023 = vpop.f32.mrb[0].mxu0
  %v1024 = vadd.f32 %v939, %v1023
  %v1025 = vpop.f32.mrb[0].mxu0
  %v1026 = vpop.f32.mrb[0].mxu0
  %v1027 = vadd.f32 %v939, %v1026
  %v1028 = vpop.f32.mrb[0].mxu0
  %1029 = vdwg.mxu0
  %1030 = vst [vmem:[#allocation3] sm:$0xff] %v1000
  %1031 = vst [vmem:[#allocation3 + $0x8] sm:$0xff] %v1003
  %1032 = vst [vmem:[#allocation3 + $0x10] sm:$0xff] %v1008
  %1033 = vst [vmem:[#allocation3 + $0x18] sm:$0xff] %v1011
  %1034 = vst [vmem:[#allocation3 + $0x20] sm:$0xff] %v1016
  %1035 = vst [vmem:[#allocation3 + $0x28] sm:$0xff] %v1019
  %1036 = vst [vmem:[#allocation3 + $0x30] sm:$0xff] %v1024
  %1037 = vst [vmem:[#allocation3 + $0x38] sm:$0xff] %v1027
  %v1038 = vld [vmem:[#allocation3] sm:$0xff]
  %v1043 = vunpack.c.l.b16 %v926
  %v1044 = vunpack.c.l.b16 %v927
  %v1045 = vunpack.c.l.b16 %v928
  %v1046 = vunpack.c.l.b16 %v929
  %v1047 = vpack.c.b16 %v1044, %v1043
  %v1048 = vpack.c.b16 %v1046, %v1045
  %1051 = vmatprep.subr.bf16.mxu0 0
  %1052 = vmatpush1.bf16.msra.mxu0 %v1047
  %1053 = vmatprep.subr.bf16.mxu0 0
  %1054 = vmatpush1.bf16.msra.mxu0 %v1048
  %1055 = vmatprep.subr.bf16.mxu0 0
  %1056 = vmatpush1.bf16.msra.mxu0 0
  %1057 = vmatprep.subr.bf16.mxu0 0
  %1058 = vmatpush1.bf16.msra.mxu0 0
  %1059 = vmatprep.subr.bf16.mxu0 0
  %1060 = vmatpush1.bf16.msra.mxu0 0
  %1061 = vmatprep.subr.bf16.mxu0 0
  %1062 = vmatpush1.bf16.msra.mxu0 0
  %1063 = vmatprep.subr.bf16.mxu0 0
  %1064 = vmatpush1.bf16.msra.mxu0 0
  %1065 = vmatprep.subr.bf16.mxu0 0
  %1066 = vmatpush1.bf16.msra.mxu0 0
  %1067 = vmatprep.subr.bf16.mxu0 0
  %1068 = vmatpush1.bf16.msra.mxu0 0
  %1069 = vmatprep.subr.bf16.mxu0 0
  %1070 = vmatpush1.bf16.msra.mxu0 0
  %1071 = vmatprep.subr.bf16.mxu0 0
  %1072 = vmatpush1.bf16.msra.mxu0 0
  %1073 = vmatprep.subr.bf16.mxu0 0
  %1074 = vmatpush1.bf16.msra.mxu0 0
  %1075 = vmatprep.subr.bf16.mxu0 0
  %1076 = vmatpush1.bf16.msra.mxu0 0
  %1077 = vmatprep.subr.bf16.mxu0 0
  %1078 = vmatpush1.bf16.msra.mxu0 0
  %1079 = vmatprep.subr.bf16.mxu0 0
  %1080 = vmatpush1.bf16.msra.mxu0 0
  %1081 = vmatprep.subr.bf16.mxu0 0
  %1082 = vmatpush1.bf16.msra.mxu0 0
  %1083 = vmatprep.mubr.bf16.mxu0 0
  %1084 = vmatmul.mubr.bf16.gmra.mrb[0].mxu0 %v344
  %v1085 = vpop.f32.mrb[0].mxu0
  %v1086 = vadd.f32 0.0, %v1085
  %v1087 = vpop.f32.mrb[0].mxu0
  %v1088 = vpop.f32.mrb[0].mxu0
  %v1089 = vpop.f32.mrb[0].mxu0
  %1090 = vdwg.mxu0
  %v1091 = vadd.f32 %v1038, %v1086
  %v1092 = vtanh.pop %v1091
  %v1093 = vmul.f32 %v1092, %v215
  %v1094 = vadd.f32 %v1093, %v216
  %v1095 = vmul.f32 %v1094, 0.0
  %1097 = vrot.lane.b32.xlu0 %v1094, 64
  %v1098 = vpop.permute.xlu0 %1097
  %v1100 = vmul.f32 %v1094, %v1098
  %1102 = vrot.lane.b32.xlu0 %v1100, 32
  %v1103 = vpop.permute.xlu0 %1102
  %v1105 = vadd.f32 %v1095, %v1103
  %v1106 = vtanh.pop %v1105
  %1108 = vrot.lane.b32.xlu0 %v1106, 64
  %v1109 = vpop.permute.xlu0 %1108
  %v1111 = vmul.f32 %v1094, %v1109
  %v1112 = vld [vmem:[#allocation3 + $0x8] sm:$0xff]
  %v1113 = vpack.c.bf16 %v1111, %v1111
  %1115 = vrot.lane.b32.xlu0 %v1113, 32
  %v1116 = vpop.permute.xlu0 %1115
  %v1118 = vsel %vm244, %v1116, 0
  %1120 = vmatprep.subr.bf16.mxu0 0
  %1121 = vmatpush1.bf16.msra.mxu0 %v1047
  %1122 = vmatprep.subr.bf16.mxu0 0
  %1123 = vmatpush1.bf16.msra.mxu0 %v1048
  %1124 = vmatprep.subr.bf16.mxu0 0
  %1125 = vmatpush1.bf16.msra.mxu0 0
  %1126 = vmatprep.subr.bf16.mxu0 0
  %1127 = vmatpush1.bf16.msra.mxu0 0
  %1128 = vmatprep.subr.bf16.mxu0 0
  %1129 = vmatpush1.bf16.msra.mxu0 0
  %1130 = vmatprep.subr.bf16.mxu0 0
  %1131 = vmatpush1.bf16.msra.mxu0 0
  %1132 = vmatprep.subr.bf16.mxu0 0
  %1133 = vmatpush1.bf16.msra.mxu0 0
  %1134 = vmatprep.subr.bf16.mxu0 0
  %1135 = vmatpush1.bf16.msra.mxu0 0
  %1136 = vmatprep.subr.bf16.mxu0 0
  %1137 = vmatpush1.bf16.msra.mxu0 0
  %1138 = vmatprep.subr.bf16.mxu0 0
  %1139 = vmatpush1.bf16.msra.mxu0 0
  %1140 = vmatprep.subr.bf16.mxu0 0
  %1141 = vmatpush1.bf16.msra.mxu0 0
  %1142 = vmatprep.subr.bf16.mxu0 0
  %1143 = vmatpush1.bf16.msra.mxu0 0
  %1144 = vmatprep.subr.bf16.mxu0 0
  %1145 = vmatpush1.bf16.msra.mxu0 0
  %1146 = vmatprep.subr.bf16.mxu0 0
  %1147 = vmatpush1.bf16.msra.mxu0 0
  %1148 = vmatprep.subr.bf16.mxu0 0
  %1149 = vmatpush1.bf16.msra.mxu0 0
  %1150 = vmatprep.subr.bf16.mxu0 0
  %1151 = vmatpush1.bf16.msra.mxu0 0
  %1152 = vmatprep.mubr.bf16.mxu0 0
  %1153 = vmatmul.mubr.bf16.gmra.mrb[0].mxu0 %v1118
  %v1154 = vpop.f32.mrb[0].mxu0
  %v1155 = vadd.f32 0.0, %v1154
  %v1156 = vpop.f32.mrb[0].mxu0
  %v1157 = vpop.f32.mrb[0].mxu0
  %v1158 = vpop.f32.mrb[0].mxu0
  %1159 = vdwg.mxu0
  %v1160 = vadd.f32 %v1112, %v1155
  %v1161 = vtanh.pop %v1160
  %v1162 = vmul.f32 %v1161, %v215
  %v1163 = vadd.f32 %v1162, %v216
  %v1164 = vmul.f32 %v1163, %v1105
  %1166 = vrot.lane.b32.xlu0 %v1163, 64
  %v1167 = vpop.permute.xlu0 %1166
  %v1169 = vmul.f32 %v1163, %v1167
  %1171 = vrot.lane.b32.xlu0 %v1169, 32
  %v1172 = vpop.permute.xlu0 %1171
  %v1174 = vadd.f32 %v1164, %v1172
  %v1175 = vtanh.pop %v1174
  %1177 = vrot.lane.b32.xlu0 %v1175, 64
  %v1178 = vpop.permute.xlu0 %1177
  %v1180 = vmul.f32 %v1163, %v1178
  %v1181 = vld [vmem:[#allocation3 + $0x10] sm:$0xff]
  %v1182 = vpack.c.bf16 %v1180, %v1180
  %1184 = vrot.lane.b32.xlu0 %v1182, 32
  %v1185 = vpop.permute.xlu0 %1184
  %v1187 = vsel %vm244, %v1185, 0
  %1189 = vmatprep.subr.bf16.mxu0 0
  %1190 = vmatpush1.bf16.msra.mxu0 %v1047
  %1191 = vmatprep.subr.bf16.mxu0 0
  %1192 = vmatpush1.bf16.msra.mxu0 %v1048
  %1193 = vmatprep.subr.bf16.mxu0 0
  %1194 = vmatpush1.bf16.msra.mxu0 0
  %1195 = vmatprep.subr.bf16.mxu0 0
  %1196 = vmatpush1.bf16.msra.mxu0 0
  %1197 = vmatprep.subr.bf16.mxu0 0
  %1198 = vmatpush1.bf16.msra.mxu0 0
  %1199 = vmatprep.subr.bf16.mxu0 0
  %1200 = vmatpush1.bf16.msra.mxu0 0
  %1201 = vmatprep.subr.bf16.mxu0 0
  %1202 = vmatpush1.bf16.msra.mxu0 0
  %1203 = vmatprep.subr.bf16.mxu0 0
  %1204 = vmatpush1.bf16.msra.mxu0 0
  %1205 = vmatprep.subr.bf16.mxu0 0
  %1206 = vmatpush1.bf16.msra.mxu0 0
  %1207 = vmatprep.subr.bf16.mxu0 0
  %1208 = vmatpush1.bf16.msra.mxu0 0
  %1209 = vmatprep.subr.bf16.mxu0 0
  %1210 = vmatpush1.bf16.msra.mxu0 0
  %1211 = vmatprep.subr.bf16.mxu0 0
  %1212 = vmatpush1.bf16.msra.mxu0 0
  %1213 = vmatprep.subr.bf16.mxu0 0
  %1214 = vmatpush1.bf16.msra.mxu0 0
  %1215 = vmatprep.subr.bf16.mxu0 0
  %1216 = vmatpush1.bf16.msra.mxu0 0
  %1217 = vmatprep.subr.bf16.mxu0 0
  %1218 = vmatpush1.bf16.msra.mxu0 0
  %1219 = vmatprep.subr.bf16.mxu0 0
  %1220 = vmatpush1.bf16.msra.mxu0 0
  %1221 = vmatprep.mubr.bf16.mxu0 0
  %1222 = vmatmul.mubr.bf16.gmra.mrb[0].mxu0 %v1187
  %v1223 = vpop.f32.mrb[0].mxu0
  %v1224 = vadd.f32 0.0, %v1223
  %v1225 = vpop.f32.mrb[0].mxu0
  %v1226 = vpop.f32.mrb[0].mxu0
  %v1227 = vpop.f32.mrb[0].mxu0
  %1228 = vdwg.mxu0
  %v1229 = vadd.f32 %v1181, %v1224
  %v1230 = vtanh.pop %v1229
  %v1231 = vmul.f32 %v1230, %v215
  %v1232 = vadd.f32 %v1231, %v216
  %v1233 = vmul.f32 %v1232, %v1174
  %1235 = vrot.lane.b32.xlu0 %v1232, 64
  %v1236 = vpop.permute.xlu0 %1235
  %v1238 = vmul.f32 %v1232, %v1236
  %1240 = vrot.lane.b32.xlu0 %v1238, 32
  %v1241 = vpop.permute.xlu0 %1240
  %v1243 = vadd.f32 %v1233, %v1241
  %v1244 = vtanh.pop %v1243
  %1246 = vrot.lane.b32.xlu0 %v1244, 64
  %v1247 = vpop.permute.xlu0 %1246
  %v1249 = vmul.f32 %v1232, %v1247
  %v1250 = vld [vmem:[#allocation3 + $0x18] sm:$0xff]
  %v1251 = vpack.c.bf16 %v1249, %v1249
  %1253 = vrot.lane.b32.xlu0 %v1251, 32
  %v1254 = vpop.permute.xlu0 %1253
  %v1256 = vsel %vm244, %v1254, 0
  %1258 = vmatprep.subr.bf16.mxu0 0
  %1259 = vmatpush1.bf16.msra.mxu0 %v1047
  %1260 = vmatprep.subr.bf16.mxu0 0
  %1261 = vmatpush1.bf16.msra.mxu0 %v1048
  %1262 = vmatprep.subr.bf16.mxu0 0
  %1263 = vmatpush1.bf16.msra.mxu0 0
  %1264 = vmatprep.subr.bf16.mxu0 0
  %1265 = vmatpush1.bf16.msra.mxu0 0
  %1266 = vmatprep.subr.bf16.mxu0 0
  %1267 = vmatpush1.bf16.msra.mxu0 0
  %1268 = vmatprep.subr.bf16.mxu0 0
  %1269 = vmatpush1.bf16.msra.mxu0 0
  %1270 = vmatprep.subr.bf16.mxu0 0
  %1271 = vmatpush1.bf16.msra.mxu0 0
  %1272 = vmatprep.subr.bf16.mxu0 0
  %1273 = vmatpush1.bf16.msra.mxu0 0
  %1274 = vmatprep.subr.bf16.mxu0 0
  %1275 = vmatpush1.bf16.msra.mxu0 0
  %1276 = vmatprep.subr.bf16.mxu0 0
  %1277 = vmatpush1.bf16.msra.mxu0 0
  %1278 = vmatprep.subr.bf16.mxu0 0
  %1279 = vmatpush1.bf16.msra.mxu0 0
  %1280 = vmatprep.subr.bf16.mxu0 0
  %1281 = vmatpush1.bf16.msra.mxu0 0
  %1282 = vmatprep.subr.bf16.mxu0 0
  %1283 = vmatpush1.bf16.msra.mxu0 0
  %1284 = vmatprep.subr.bf16.mxu0 0
  %1285 = vmatpush1.bf16.msra.mxu0 0
  %1286 = vmatprep.subr.bf16.mxu0 0
  %1287 = vmatpush1.bf16.msra.mxu0 0
  %1288 = vmatprep.subr.bf16.mxu0 0
  %1289 = vmatpush1.bf16.msra.mxu0 0
  %1290 = vmatprep.mubr.bf16.mxu0 0
  %1291 = vmatmul.mubr.bf16.gmra.mrb[0].mxu0 %v1256
  %v1292 = vpop.f32.mrb[0].mxu0
  %v1293 = vadd.f32 0.0, %v1292
  %v1294 = vpop.f32.mrb[0].mxu0
  %v1295 = vpop.f32.mrb[0].mxu0
  %v1296 = vpop.f32.mrb[0].mxu0
  %1297 = vdwg.mxu0
  %v1298 = vadd.f32 %v1250, %v1293
  %v1299 = vtanh.pop %v1298
  %v1300 = vmul.f32 %v1299, %v215
  %v1301 = vadd.f32 %v1300, %v216
  %v1302 = vmul.f32 %v1301, %v1243
  %1304 = vrot.lane.b32.xlu0 %v1301, 64
  %v1305 = vpop.permute.xlu0 %1304
  %v1307 = vmul.f32 %v1301, %v1305
  %1309 = vrot.lane.b32.xlu0 %v1307, 32
  %v1310 = vpop.permute.xlu0 %1309
  %v1312 = vadd.f32 %v1302, %v1310
  %v1313 = vtanh.pop %v1312
  %1315 = vrot.lane.b32.xlu0 %v1313, 64
  %v1316 = vpop.permute.xlu0 %1315
  %v1318 = vmul.f32 %v1301, %v1316
  %v1319 = vld [vmem:[#allocation3 + $0x20] sm:$0xff]
  %v1320 = vpack.c.bf16 %v1318, %v1318
  %1322 = vrot.lane.b32.xlu0 %v1320, 32
  %v1323 = vpop.permute.xlu0 %1322
  %v1325 = vsel %vm244, %v1323, 0
  %1327 = vmatprep.subr.bf16.mxu0 0
  %1328 = vmatpush1.bf16.msra.mxu0 %v1047
  %1329 = vmatprep.subr.bf16.mxu0 0
  %1330 = vmatpush1.bf16.msra.mxu0 %v1048
  %1331 = vmatprep.subr.bf16.mxu0 0
  %1332 = vmatpush1.bf16.msra.mxu0 0
  %1333 = vmatprep.subr.bf16.mxu0 0
  %1334 = vmatpush1.bf16.msra.mxu0 0
  %1335 = vmatprep.subr.bf16.mxu0 0
  %1336 = vmatpush1.bf16.msra.mxu0 0
  %1337 = vmatprep.subr.bf16.mxu0 0
  %1338 = vmatpush1.bf16.msra.mxu0 0
  %1339 = vmatprep.subr.bf16.mxu0 0
  %1340 = vmatpush1.bf16.msra.mxu0 0
  %1341 = vmatprep.subr.bf16.mxu0 0
  %1342 = vmatpush1.bf16.msra.mxu0 0
  %1343 = vmatprep.subr.bf16.mxu0 0
  %1344 = vmatpush1.bf16.msra.mxu0 0
  %1345 = vmatprep.subr.bf16.mxu0 0
  %1346 = vmatpush1.bf16.msra.mxu0 0
  %1347 = vmatprep.subr.bf16.mxu0 0
  %1348 = vmatpush1.bf16.msra.mxu0 0
  %1349 = vmatprep.subr.bf16.mxu0 0
  %1350 = vmatpush1.bf16.msra.mxu0 0
  %1351 = vmatprep.subr.bf16.mxu0 0
  %1352 = vmatpush1.bf16.msra.mxu0 0
  %1353 = vmatprep.subr.bf16.mxu0 0
  %1354 = vmatpush1.bf16.msra.mxu0 0
  %1355 = vmatprep.subr.bf16.mxu0 0
  %1356 = vmatpush1.bf16.msra.mxu0 0
  %1357 = vmatprep.subr.bf16.mxu0 0
  %1358 = vmatpush1.bf16.msra.mxu0 0
  %1359 = vmatprep.mubr.bf16.mxu0 0
  %1360 = vmatmul.mubr.bf16.gmra.mrb[0].mxu0 %v1325
  %v1361 = vpop.f32.mrb[0].mxu0
  %v1362 = vadd.f32 0.0, %v1361
  %v1363 = vpop.f32.mrb[0].mxu0
  %v1364 = vpop.f32.mrb[0].mxu0
  %v1365 = vpop.f32.mrb[0].mxu0
  %1366 = vdwg.mxu0
  %v1367 = vadd.f32 %v1319, %v1362
  %v1368 = vtanh.pop %v1367
  %v1369 = vmul.f32 %v1368, %v215
  %v1370 = vadd.f32 %v1369, %v216
  %v1371 = vmul.f32 %v1370, %v1312
  %1373 = vrot.lane.b32.xlu0 %v1370, 64
  %v1374 = vpop.permute.xlu0 %1373
  %v1376 = vmul.f32 %v1370, %v1374
  %1378 = vrot.lane.b32.xlu0 %v1376, 32
  %v1379 = vpop.permute.xlu0 %1378
  %v1381 = vadd.f32 %v1371, %v1379
  %v1382 = vtanh.pop %v1381
  %1384 = vrot.lane.b32.xlu0 %v1382, 64
  %v1385 = vpop.permute.xlu0 %1384
  %v1387 = vmul.f32 %v1370, %v1385
  %v1388 = vld [vmem:[#allocation3 + $0x28] sm:$0xff]
  %v1389 = vpack.c.bf16 %v1387, %v1387
  %1391 = vrot.lane.b32.xlu0 %v1389, 32
  %v1392 = vpop.permute.xlu0 %1391
  %v1394 = vsel %vm244, %v1392, 0
  %1396 = vmatprep.subr.bf16.mxu0 0
  %1397 = vmatpush1.bf16.msra.mxu0 %v1047
  %1398 = vmatprep.subr.bf16.mxu0 0
  %1399 = vmatpush1.bf16.msra.mxu0 %v1048
  %1400 = vmatprep.subr.bf16.mxu0 0
  %1401 = vmatpush1.bf16.msra.mxu0 0
  %1402 = vmatprep.subr.bf16.mxu0 0
  %1403 = vmatpush1.bf16.msra.mxu0 0
  %1404 = vmatprep.subr.bf16.mxu0 0
  %1405 = vmatpush1.bf16.msra.mxu0 0
  %1406 = vmatprep.subr.bf16.mxu0 0
  %1407 = vmatpush1.bf16.msra.mxu0 0
  %1408 = vmatprep.subr.bf16.mxu0 0
  %1409 = vmatpush1.bf16.msra.mxu0 0
  %1410 = vmatprep.subr.bf16.mxu0 0
  %1411 = vmatpush1.bf16.msra.mxu0 0
  %1412 = vmatprep.subr.bf16.mxu0 0
  %1413 = vmatpush1.bf16.msra.mxu0 0
  %1414 = vmatprep.subr.bf16.mxu0 0
  %1415 = vmatpush1.bf16.msra.mxu0 0
  %1416 = vmatprep.subr.bf16.mxu0 0
  %1417 = vmatpush1.bf16.msra.mxu0 0
  %1418 = vmatprep.subr.bf16.mxu0 0
  %1419 = vmatpush1.bf16.msra.mxu0 0
  %1420 = vmatprep.subr.bf16.mxu0 0
  %1421 = vmatpush1.bf16.msra.mxu0 0
  %1422 = vmatprep.subr.bf16.mxu0 0
  %1423 = vmatpush1.bf16.msra.mxu0 0
  %1424 = vmatprep.subr.bf16.mxu0 0
  %1425 = vmatpush1.bf16.msra.mxu0 0
  %1426 = vmatprep.subr.bf16.mxu0 0
  %1427 = vmatpush1.bf16.msra.mxu0 0
  %1428 = vmatprep.mubr.bf16.mxu0 0
  %1429 = vmatmul.mubr.bf16.gmra.mrb[0].mxu0 %v1394
  %v1430 = vpop.f32.mrb[0].mxu0
  %v1431 = vadd.f32 0.0, %v1430
  %v1432 = vpop.f32.mrb[0].mxu0
  %v1433 = vpop.f32.mrb[0].mxu0
  %v1434 = vpop.f32.mrb[0].mxu0
  %1435 = vdwg.mxu0
  %v1436 = vadd.f32 %v1388, %v1431
  %v1437 = vtanh.pop %v1436
  %v1438 = vmul.f32 %v1437, %v215
  %v1439 = vadd.f32 %v1438, %v216
  %v1440 = vmul.f32 %v1439, %v1381
  %1442 = vrot.lane.b32.xlu0 %v1439, 64
  %v1443 = vpop.permute.xlu0 %1442
  %v1445 = vmul.f32 %v1439, %v1443
  %1447 = vrot.lane.b32.xlu0 %v1445, 32
  %v1448 = vpop.permute.xlu0 %1447
  %v1450 = vadd.f32 %v1440, %v1448
  %v1451 = vtanh.pop %v1450
  %1453 = vrot.lane.b32.xlu0 %v1451, 64
  %v1454 = vpop.permute.xlu0 %1453
  %v1456 = vmul.f32 %v1439, %v1454
  %v1457 = vld [vmem:[#allocation3 + $0x30] sm:$0xff]
  %v1458 = vpack.c.bf16 %v1456, %v1456
  %1460 = vrot.lane.b32.xlu0 %v1458, 32
  %v1461 = vpop.permute.xlu0 %1460
  %v1463 = vsel %vm244, %v1461, 0
  %1465 = vmatprep.subr.bf16.mxu0 0
  %1466 = vmatpush1.bf16.msra.mxu0 %v1047
  %1467 = vmatprep.subr.bf16.mxu0 0
  %1468 = vmatpush1.bf16.msra.mxu0 %v1048
  %1469 = vmatprep.subr.bf16.mxu0 0
  %1470 = vmatpush1.bf16.msra.mxu0 0
  %1471 = vmatprep.subr.bf16.mxu0 0
  %1472 = vmatpush1.bf16.msra.mxu0 0
  %1473 = vmatprep.subr.bf16.mxu0 0
  %1474 = vmatpush1.bf16.msra.mxu0 0
  %1475 = vmatprep.subr.bf16.mxu0 0
  %1476 = vmatpush1.bf16.msra.mxu0 0
  %1477 = vmatprep.subr.bf16.mxu0 0
  %1478 = vmatpush1.bf16.msra.mxu0 0
  %1479 = vmatprep.subr.bf16.mxu0 0
  %1480 = vmatpush1.bf16.msra.mxu0 0
  %1481 = vmatprep.subr.bf16.mxu0 0
  %1482 = vmatpush1.bf16.msra.mxu0 0
  %1483 = vmatprep.subr.bf16.mxu0 0
  %1484 = vmatpush1.bf16.msra.mxu0 0
  %1485 = vmatprep.subr.bf16.mxu0 0
  %1486 = vmatpush1.bf16.msra.mxu0 0
  %1487 = vmatprep.subr.bf16.mxu0 0
  %1488 = vmatpush1.bf16.msra.mxu0 0
  %1489 = vmatprep.subr.bf16.mxu0 0
  %1490 = vmatpush1.bf16.msra.mxu0 0
  %1491 = vmatprep.subr.bf16.mxu0 0
  %1492 = vmatpush1.bf16.msra.mxu0 0
  %1493 = vmatprep.subr.bf16.mxu0 0
  %1494 = vmatpush1.bf16.msra.mxu0 0
  %1495 = vmatprep.subr.bf16.mxu0 0
  %1496 = vmatpush1.bf16.msra.mxu0 0
  %1497 = vmatprep.mubr.bf16.mxu0 0
  %1498 = vmatmul.mubr.bf16.gmra.mrb[0].mxu0 %v1463
  %v1499 = vpop.f32.mrb[0].mxu0
  %v1500 = vadd.f32 0.0, %v1499
  %v1501 = vpop.f32.mrb[0].mxu0
  %v1502 = vpop.f32.mrb[0].mxu0
  %v1503 = vpop.f32.mrb[0].mxu0
  %1504 = vdwg.mxu0
  %v1505 = vadd.f32 %v1457, %v1500
  %v1506 = vtanh.pop %v1505
  %v1507 = vmul.f32 %v1506, %v215
  %v1508 = vadd.f32 %v1507, %v216
  %v1509 = vmul.f32 %v1508, %v1450
  %1511 = vrot.lane.b32.xlu0 %v1508, 64
  %v1512 = vpop.permute.xlu0 %1511
  %v1514 = vmul.f32 %v1508, %v1512
  %1516 = vrot.lane.b32.xlu0 %v1514, 32
  %v1517 = vpop.permute.xlu0 %1516
  %v1519 = vadd.f32 %v1509, %v1517
  %v1520 = vtanh.pop %v1519
  %1522 = vrot.lane.b32.xlu0 %v1520, 64
  %v1523 = vpop.permute.xlu0 %1522
  %v1525 = vmul.f32 %v1508, %v1523
  %v1526 = vld [vmem:[#allocation3 + $0x38] sm:$0xff]
  %v1527 = vpack.c.bf16 %v1525, %v1525
  %1529 = vrot.lane.b32.xlu0 %v1527, 32
  %v1530 = vpop.permute.xlu0 %1529
  %v1532 = vsel %vm244, %v1530, 0
  %1534 = vmatprep.subr.bf16.mxu0 0
  %1535 = vmatpush1.bf16.msra.mxu0 %v1047
  %1536 = vmatprep.subr.bf16.mxu0 0
  %1537 = vmatpush1.bf16.msra.mxu0 %v1048
  %1538 = vmatprep.subr.bf16.mxu0 0
  %1539 = vmatpush1.bf16.msra.mxu0 0
  %1540 = vmatprep.subr.bf16.mxu0 0
  %1541 = vmatpush1.bf16.msra.mxu0 0
  %1542 = vmatprep.subr.bf16.mxu0 0
  %1543 = vmatpush1.bf16.msra.mxu0 0
  %1544 = vmatprep.subr.bf16.mxu0 0
  %1545 = vmatpush1.bf16.msra.mxu0 0
  %1546 = vmatprep.subr.bf16.mxu0 0
  %1547 = vmatpush1.bf16.msra.mxu0 0
  %1548 = vmatprep.subr.bf16.mxu0 0
  %1549 = vmatpush1.bf16.msra.mxu0 0
  %1550 = vmatprep.subr.bf16.mxu0 0
  %1551 = vmatpush1.bf16.msra.mxu0 0
  %1552 = vmatprep.subr.bf16.mxu0 0
  %1553 = vmatpush1.bf16.msra.mxu0 0
  %1554 = vmatprep.subr.bf16.mxu0 0
  %1555 = vmatpush1.bf16.msra.mxu0 0
  %1556 = vmatprep.subr.bf16.mxu0 0
  %1557 = vmatpush1.bf16.msra.mxu0 0
  %1558 = vmatprep.subr.bf16.mxu0 0
  %1559 = vmatpush1.bf16.msra.mxu0 0
  %1560 = vmatprep.subr.bf16.mxu0 0
  %1561 = vmatpush1.bf16.msra.mxu0 0
  %1562 = vmatprep.subr.bf16.mxu0 0
  %1563 = vmatpush1.bf16.msra.mxu0 0
  %1564 = vmatprep.subr.bf16.mxu0 0
  %1565 = vmatpush1.bf16.msra.mxu0 0
  %1566 = vmatprep.mubr.bf16.mxu0 0
  %1567 = vmatmul.mubr.bf16.gmra.mrb[0].mxu0 %v1532
  %v1568 = vpop.f32.mrb[0].mxu0
  %v1569 = vadd.f32 0.0, %v1568
  %v1570 = vpop.f32.mrb[0].mxu0
  %v1571 = vpop.f32.mrb[0].mxu0
  %v1572 = vpop.f32.mrb[0].mxu0
  %1573 = vdwg.mxu0
  %v1574 = vadd.f32 %v1526, %v1569
  %v1575 = vtanh.pop %v1574
  %v1576 = vmul.f32 %v1575, %v215
  %v1577 = vadd.f32 %v1576, %v216
  %v1578 = vmul.f32 %v1577, %v1519
  %1580 = vrot.lane.b32.xlu0 %v1577, 64
  %v1581 = vpop.permute.xlu0 %1580
  %v1583 = vmul.f32 %v1577, %v1581
  %1585 = vrot.lane.b32.xlu0 %v1583, 32
  %v1586 = vpop.permute.xlu0 %1585
  %v1588 = vadd.f32 %v1578, %v1586
  %v1589 = vtanh.pop %v1588
  %1591 = vrot.lane.b32.xlu0 %v1589, 64
  %v1592 = vpop.permute.xlu0 %1591
  %v1594 = vmul.f32 %v1577, %v1592
  %v1595 = vpack.c.bf16 %v1594, %v1594
  %v1596 = vld [vmem:[%s8] sm:$0xf]
  %v1597 = vld [vmem:[%s8 + $0x4] sm:$0xf]
  %v1598 = vld [vmem:[%s8 + $0x8] sm:$0xf]
  %v1599 = vld [vmem:[%s8 + $0xc] sm:$0xf]
  %v1600 = vld [vmem:[%s9] sm:$0x1]
  %v1602 = vlaneseq
  %v1603 = vshrl.u32 %v1602, 7
  %v1604 = vsub.s32 0, %v1603
  %v1605 = vrot.slane %v1600, %v1604
  %1608 = vrot.lane.b32.xlu0 %v1595, 32
  %v1609 = vpop.permute.xlu0 %1608
  %v1614 = vunpack.c.l.b16 %v1596
  %v1615 = vunpack.c.l.b16 %v1597
  %v1616 = vunpack.c.l.b16 %v1598
  %v1617 = vunpack.c.l.b16 %v1599
  %v1618 = vpack.c.b16 %v1615, %v1614
  %v1619 = vpack.c.b16 %v1617, %v1616
  %v1623 = vsel %vm244, %v1609, 0
  %1625 = vmatprep.subr.bf16.mxu0 0
  %1626 = vmatpush1.bf16.msra.mxu0 %v1618
  %1627 = vmatprep.subr.bf16.mxu0 0
  %1628 = vmatpush1.bf16.msra.mxu0 %v1619
  %1629 = vmatprep.subr.bf16.mxu0 0
  %1630 = vmatpush1.bf16.msra.mxu0 0
  %1631 = vmatprep.subr.bf16.mxu0 0
  %1632 = vmatpush1.bf16.msra.mxu0 0
  %1633 = vmatprep.subr.bf16.mxu0 0
  %1634 = vmatpush1.bf16.msra.mxu0 0
  %1635 = vmatprep.subr.bf16.mxu0 0
  %1636 = vmatpush1.bf16.msra.mxu0 0
  %1637 = vmatprep.subr.bf16.mxu0 0
  %1638 = vmatpush1.bf16.msra.mxu0 0
  %1639 = vmatprep.subr.bf16.mxu0 0
  %1640 = vmatpush1.bf16.msra.mxu0 0
  %1641 = vmatprep.subr.bf16.mxu0 0
  %1642 = vmatpush1.bf16.msra.mxu0 0
  %1643 = vmatprep.subr.bf16.mxu0 0
  %1644 = vmatpush1.bf16.msra.mxu0 0
  %1645 = vmatprep.subr.bf16.mxu0 0
  %1646 = vmatpush1.bf16.msra.mxu0 0
  %1647 = vmatprep.subr.bf16.mxu0 0
  %1648 = vmatpush1.bf16.msra.mxu0 0
  %1649 = vmatprep.subr.bf16.mxu0 0
  %1650 = vmatpush1.bf16.msra.mxu0 0
  %1651 = vmatprep.subr.bf16.mxu0 0
  %1652 = vmatpush1.bf16.msra.mxu0 0
  %1653 = vmatprep.subr.bf16.mxu0 0
  %1654 = vmatpush1.bf16.msra.mxu0 0
  %1655 = vmatprep.subr.bf16.mxu0 0
  %1656 = vmatpush1.bf16.msra.mxu0 0
  %1657 = vmatprep.mubr.bf16.mxu0 0
  %1658 = vmatmul.mubr.bf16.gmra.mrb[0].mxu0 %v1623
  %v1659 = vpop.f32.mrb[0].mxu0
  %v1660 = vadd.f32 %v1605, %v1659
  %v1661 = vpop.f32.mrb[0].mxu0
  %v1662 = vpop.f32.mrb[0].mxu0
  %v1663 = vpop.f32.mrb[0].mxu0
  %1664 = vdwg.mxu0
  %vm1665 = vcmask 31744
  %1666 = vst.msk [vmem:[%s10] sm:$0xff] %vm1665, %v1660
  // Predicated region
  $region42: #{_forward_impl.1} parent=0 // pred_check
    _
  $region43: #{_forward_impl.1} parent=0 // pred_check_branch
    %1668 = sbr.rel (0) target = $region45
  $region44: #{_forward_impl.1} parent=0 // pred_region
    _
  $region45: #{_forward_impl.1} parent=0 // pred_fallthru
    _
  // Predicated region
  $region46: #{_forward_impl.1} parent=0 // pred_check
    _
  $region47: #{_forward_impl.1} parent=0 // pred_check_branch
    %1670 = sbr.rel (0) target = $region49
  $region48: #{_forward_impl.1} parent=0 // pred_region
    _
  $region49: #{_forward_impl.1} parent=0 // pred_fallthru
    _

</llo_original>
